<compile_context>
chip_gen: v5e
topology: v5e:2x2
jax: 0.10.0
libtpu: 0.0.40
codegen_flags: <defaults>
</compile_context>

<pallas_src>
import math
import functools

import jax
import jax.numpy as jnp
from jax.experimental import pallas as pl
from jax.experimental.pallas import tpu as pltpu


# ----------------------------------------------------------------------------
# Fused Pallas kernel (everything after the embedding gather)
# ----------------------------------------------------------------------------

def _vmem():
    return pl.BlockSpec(memory_space=pltpu.MemorySpace.VMEM)


def _layer_norm(x, g, b, eps):
    # Annotated-Transformer LayerNorm: a_2 * (x - mean) / (std + eps) + b_2
    # with torch.std (unbiased, ddof=1) over the last dim, eps added to std.
    d = x.shape[-1]
    mean = jnp.mean(x, axis=-1, keepdims=True)
    xc = x - mean
    var = jnp.sum(xc * xc, axis=-1, keepdims=True) * (1.0 / (d - 1))
    inv = pl.reciprocal(jnp.sqrt(var) + eps, approx=True)
    return g * xc * inv + b


def _softmax_lastdim(s):
    m = jnp.max(s, axis=-1, keepdims=True)
    e = jnp.exp(s - m)
    return e * pl.reciprocal(jnp.sum(e, axis=-1, keepdims=True), approx=True)


def _bf16_dot(a, w_bf16):
    # Activation cast to bf16, weight already bf16, accumulate in f32 (MXU).
    return jnp.dot(a.astype(jnp.bfloat16), w_bf16,
                   preferred_element_type=jnp.float32)


def _transformer_kernel(x_ref, wqkv_ref, bqkv_ref, wo_ref, bo_ref,
                        w1_ref, b1_ref, w2_ref, b2_ref,
                        lng_ref, lnb_ref, fcw_ref, fcb_ref, out_ref,
                        *, n_layers, n_heads, seq_len, n_batch, eps):
    x = x_ref[...]                                   # (B*S, D) f32 residual
    D = x.shape[-1]
    dk = D // n_heads
    scale = 1.0 / math.sqrt(dk)

    lng = lng_ref[...]                               # (2N+1, D)
    lnb = lnb_ref[...]

    for l in range(n_layers):                        # N=2: unrolled at trace time
        # ---- self-attention sublayer: x + attn(norm(x)) ----
        xn = _layer_norm(x, lng[2 * l:2 * l + 1, :], lnb[2 * l:2 * l + 1, :], eps)
        qkv = _bf16_dot(xn, wqkv_ref[l]) + bqkv_ref[l]          # (BS, 3D) f32
        # Batch-major 3D views; the reshape only splits the leading (sublane)
        # dim at an 8-row tile boundary, so it is layout-preserving.
        q = qkv[:, 0:D].reshape(n_batch, seq_len, D)
        k = qkv[:, D:2 * D].reshape(n_batch, seq_len, D)
        v = qkv[:, 2 * D:3 * D].reshape(n_batch, seq_len, D)

        head_outs = []
        for hh in range(n_heads):
            c0 = hh * dk
            qh = q[:, :, c0:c0 + dk].astype(jnp.bfloat16)        # (B, S, dk)
            kh = k[:, :, c0:c0 + dk].astype(jnp.bfloat16)
            vh = v[:, :, c0:c0 + dk].astype(jnp.bfloat16)
            s = jnp.einsum('bqd,bkd->bqk', qh, kh,
                           preferred_element_type=jnp.float32) * scale
            p = _softmax_lastdim(s)                              # (B, S, S)
            head_outs.append(
                jnp.einsum('bqk,bkd->bqd', p.astype(jnp.bfloat16), vh,
                           preferred_element_type=jnp.float32))  # (B, S, dk)
        o = jnp.concatenate(head_outs, axis=2).reshape(n_batch * seq_len, D)
        x = x + _bf16_dot(o, wo_ref[l]) + bo_ref[l]

        # ---- feed-forward sublayer: x + W2 relu(W1 norm(x) + b1) + b2 ----
        xn = _layer_norm(x, lng[2 * l + 1:2 * l + 2, :],
                         lnb[2 * l + 1:2 * l + 2, :], eps)
        h1 = jnp.maximum(_bf16_dot(xn, w1_ref[l]) + b1_ref[l], 0.0)
        x = x + _bf16_dot(h1, w2_ref[l]) + b2_ref[l]

    # ---- final_feature_map = encoded_sents[:, -1, :] (LayerNorm is per-row,
    #      so select the B last-token rows first, then normalize only those) ----
    feat = jnp.concatenate(
        [x[b * seq_len + seq_len - 1:b * seq_len + seq_len, :]
         for b in range(n_batch)],
        axis=0)                                                    # (B, D)
    featn = _layer_norm(feat, lng[2 * n_layers:2 * n_layers + 1, :],
                        lnb[2 * n_layers:2 * n_layers + 1, :], eps)

    # ---- fc -> softmax ----
    logits = _bf16_dot(featn, fcw_ref[...]) + fcb_ref[...]         # (B, C)
    out_ref[...] = _softmax_lastdim(logits)


# ----------------------------------------------------------------------------
# Parameters (packed / stacked layout for the fused kernel)
# ----------------------------------------------------------------------------

class Config:
    d_model = 32
    d_ff = 64
    h = 4
    N = 2
    dropout = 0.1          # identity at inference
    output_size = 4


def make_positional_encoding(max_len, d_model):
    # PE buffer: pe[:, 0::2] = sin(pos * div), pe[:, 1::2] = cos(pos * div)
    position = jnp.arange(max_len, dtype=jnp.float32)[:, None]
    div_term = jnp.exp(
        jnp.arange(0, d_model, 2, dtype=jnp.float32) * -(math.log(10000.0) / d_model)
    )
    angles = position * div_term[None, :]
    pe = jnp.zeros((max_len, d_model), dtype=jnp.float32)
    pe = pe.at[:, 0::2].set(jnp.sin(angles))
    pe = pe.at[:, 1::2].set(jnp.cos(angles))
    return pe


def init_params(key, cfg, src_vocab, max_len=512):
    d, dff, n = cfg.d_model, cfg.d_ff, cfg.N
    keys = jax.random.split(key, 128)
    ki = iter(keys)

    def lin_w(kin, kout):
        bound = 1.0 / math.sqrt(kin)
        return jax.random.uniform(next(ki), (kin, kout), jnp.float32, -bound, bound)

    def lin_b(kin, kout):
        bound = 1.0 / math.sqrt(kin)
        return jax.random.uniform(next(ki), (kout,), jnp.float32, -bound, bound)

    wqkv, bqkv, wo, bo, w1, b1, w2, b2 = ([] for _ in range(8))
    for _ in range(n):
        wq, bq = lin_w(d, d), lin_b(d, d)
        wk, bk = lin_w(d, d), lin_b(d, d)
        wv, bv = lin_w(d, d), lin_b(d, d)
        wqkv.append(jnp.concatenate([wq, wk, wv], axis=1))          # (D, 3D)
        bqkv.append(jnp.concatenate([bq, bk, bv], axis=0)[None, :]) # (1, 3D)
        wo.append(lin_w(d, d));   bo.append(lin_b(d, d)[None, :])
        w1.append(lin_w(d, dff)); b1.append(lin_b(d, dff)[None, :])
        w2.append(lin_w(dff, d)); b2.append(lin_b(dff, d)[None, :])

    params = {
        "embed": jax.random.normal(next(ki), (src_vocab, d), jnp.float32),
        "pe": make_positional_encoding(max_len, d),
        # matmul weights pre-cast to bf16 once (f32 accumulation in-kernel)
        "wqkv": jnp.stack(wqkv).astype(jnp.bfloat16),   # (N, D, 3D)
        "bqkv": jnp.stack(bqkv),                        # (N, 1, 3D)
        "wo":   jnp.stack(wo).astype(jnp.bfloat16),     # (N, D, D)
        "bo":   jnp.stack(bo),                          # (N, 1, D)
        "w1":   jnp.stack(w1).astype(jnp.bfloat16),     # (N, D, dff)
        "b1":   jnp.stack(b1),                          # (N, 1, dff)
        "w2":   jnp.stack(w2).astype(jnp.bfloat16),     # (N, dff, D)
        "b2":   jnp.stack(b2),                          # (N, 1, D)
        # rows 2l / 2l+1 = norm1 / norm2 of layer l; row 2N = encoder final norm
        "ln_g": jnp.ones((2 * n + 1, d), jnp.float32),
        "ln_b": jnp.zeros((2 * n + 1, d), jnp.float32),
        "fc_w": lin_w(d, cfg.output_size).astype(jnp.bfloat16),     # (D, C)
        "fc_b": lin_b(d, cfg.output_size)[None, :],                 # (1, C)
    }
    return params


# ----------------------------------------------------------------------------
# Forward (one gather in XLA, then a single fused pallas_call)
# ----------------------------------------------------------------------------

def transformer_tpe_reduce_forward(tokens, params, cfg):
    d = cfg.d_model
    x = tokens.T                                     # permute(1, 0) -> (B, S)
    B, S = x.shape
    # TODO(synk): the nn.Embedding lookup stays as one XLA gather outside the
    # fused kernel (data-dependent gather); everything downstream is fused.
    emb = jnp.take(params["embed"], x, axis=0) * math.sqrt(d)       # (B, S, D)
    emb = emb + params["pe"][None, :S, :]                           # PE (dropout=id)
    x2d = emb.reshape(B * S, d)

    kernel = functools.partial(
        _transformer_kernel,
        n_layers=cfg.N, n_heads=cfg.h, seq_len=S, n_batch=B, eps=1e-6)

    return pl.pallas_call(
        kernel,
        out_shape=jax.ShapeDtypeStruct((B, cfg.output_size), jnp.float32),
        in_specs=[_vmem()] * 13,
        out_specs=_vmem(),
    )(x2d,
      params["wqkv"], params["bqkv"], params["wo"], params["bo"],
      params["w1"], params["b1"], params["w2"], params["b2"],
      params["ln_g"], params["ln_b"], params["fc_w"], params["fc_b"])


# ----------------------------------------------------------------------------
# Main
# ----------------------------------------------------------------------------

if __name__ == "__main__":
    cfg = Config()
    src_vocab = 50
    seq_len, batch = 8, 2

    key = jax.random.PRNGKey(0)
    k_param, k_tok = jax.random.split(key)
    params = init_params(k_param, cfg, src_vocab)

    tokens = jax.random.randint(k_tok, (seq_len, batch), 0, src_vocab,
                                dtype=jnp.int32)

    fwd = jax.jit(lambda t, p: transformer_tpe_reduce_forward(t, p, cfg))
    out = jax.block_until_ready(fwd(tokens, params))

    assert out.shape == (batch, cfg.output_size)
    assert bool(jnp.all(jnp.isfinite(out)))
    # rows of a softmax sum to ~1 (approx EUP reciprocal -> loose tolerance)
    assert bool(jnp.allclose(jnp.sum(out, axis=-1), 1.0, atol=1e-2))
    assert bool(jnp.all(out >= 0.0)) and bool(jnp.all(out <= 1.0 + 1e-3))
    print("KERNEL_OK")
</pallas_src>

<mosaic_0001>
module attributes {stable_mosaic.version = 11 : i64} {
  func.func @_transformer_kernel(%arg0: memref<16x32xf32, #tpu.memory_space<vmem>>, %arg1: memref<2x32x96xbf16, #tpu.memory_space<vmem>>, %arg2: memref<2x1x96xf32, #tpu.memory_space<vmem>>, %arg3: memref<2x32x32xbf16, #tpu.memory_space<vmem>>, %arg4: memref<2x1x32xf32, #tpu.memory_space<vmem>>, %arg5: memref<2x32x64xbf16, #tpu.memory_space<vmem>>, %arg6: memref<2x1x64xf32, #tpu.memory_space<vmem>>, %arg7: memref<2x64x32xbf16, #tpu.memory_space<vmem>>, %arg8: memref<2x1x32xf32, #tpu.memory_space<vmem>>, %arg9: memref<5x32xf32, #tpu.memory_space<vmem>>, %arg10: memref<5x32xf32, #tpu.memory_space<vmem>>, %arg11: memref<32x4xbf16, #tpu.memory_space<vmem>>, %arg12: memref<1x4xf32, #tpu.memory_space<vmem>>, %arg13: memref<2x4xf32, #tpu.memory_space<vmem>>) attributes {dimension_semantics = [], scalar_prefetch = 0 : i64, scratch_operands = 0 : i64, tpu.core_type = #tpu.core_type<tc>} {
    %c0 = arith.constant 0 : index
    %c0_0 = arith.constant 0 : index
    %0 = vector.load %arg0[%c0, %c0_0] : memref<16x32xf32, #tpu.memory_space<vmem>>, vector<16x32xf32>
    %c0_1 = arith.constant 0 : index
    %c0_2 = arith.constant 0 : index
    %1 = vector.load %arg9[%c0_1, %c0_2] : memref<5x32xf32, #tpu.memory_space<vmem>>, vector<5x32xf32>
    %c0_3 = arith.constant 0 : index
    %c0_4 = arith.constant 0 : index
    %2 = vector.load %arg10[%c0_3, %c0_4] : memref<5x32xf32, #tpu.memory_space<vmem>>, vector<5x32xf32>
    %3 = vector.extract_strided_slice %1 {offsets = [0, 0], sizes = [1, 32], strides = [1, 1]} : vector<5x32xf32> to vector<1x32xf32>
    %4 = vector.extract_strided_slice %2 {offsets = [0, 0], sizes = [1, 32], strides = [1, 1]} : vector<5x32xf32> to vector<1x32xf32>
    %cst = arith.constant dense<0.000000e+00> : vector<16xf32>
    %5 = vector.multi_reduction <add>, %0, %cst [1] : vector<16x32xf32> to vector<16xf32>
    %6 = vector.shape_cast %5 : vector<16xf32> to vector<16x1xf32>
    %cst_5 = arith.constant 3.200000e+01 : f32
    %7 = vector.broadcast %cst_5 : f32 to vector<16x1xf32>
    %8 = arith.divf %6, %7 : vector<16x1xf32>
    %9 = vector.broadcast %8 : vector<16x1xf32> to vector<16x32xf32>
    %10 = arith.subf %0, %9 : vector<16x32xf32>
    %11 = arith.mulf %10, %10 : vector<16x32xf32>
    %cst_6 = arith.constant dense<0.000000e+00> : vector<16xf32>
    %12 = vector.multi_reduction <add>, %11, %cst_6 [1] : vector<16x32xf32> to vector<16xf32>
    %13 = vector.shape_cast %12 : vector<16xf32> to vector<16x1xf32>
    %cst_7 = arith.constant 0.0322580636 : f32
    %14 = vector.broadcast %cst_7 : f32 to vector<16x1xf32>
    %15 = arith.mulf %13, %14 : vector<16x1xf32>
    %16 = math.sqrt %15 : vector<16x1xf32>
    %cst_8 = arith.constant 9.99999997E-7 : f32
    %17 = vector.broadcast %cst_8 : f32 to vector<16x1xf32>
    %18 = arith.addf %16, %17 : vector<16x1xf32>
    %19 = tpu.reciprocal %18 {approx = true} : vector<16x1xf32> -> vector<16x1xf32>
    %20 = vector.broadcast %3 : vector<1x32xf32> to vector<16x32xf32>
    %21 = arith.mulf %20, %10 : vector<16x32xf32>
    %22 = vector.broadcast %19 : vector<16x1xf32> to vector<16x32xf32>
    %23 = arith.mulf %21, %22 : vector<16x32xf32>
    %24 = vector.broadcast %4 : vector<1x32xf32> to vector<16x32xf32>
    %25 = arith.addf %23, %24 : vector<16x32xf32>
    %c0_9 = arith.constant 0 : index
    %c0_10 = arith.constant 0 : index
    %c0_11 = arith.constant 0 : index
    %26 = vector.load %arg1[%c0_9, %c0_10, %c0_11] : memref<2x32x96xbf16, #tpu.memory_space<vmem>>, vector<1x32x96xbf16>
    %27 = vector.shape_cast %26 : vector<1x32x96xbf16> to vector<32x96xbf16>
    %28 = arith.truncf %25 : vector<16x32xf32> to vector<16x32xbf16>
    %cst_12 = arith.constant dense<0.000000e+00> : vector<16x96xf32>
    %29 = tpu.matmul %28, %27, %cst_12 {dimension_numbers = #tpu.dot_dimension_numbers<[1], [0], [0], [1], [0, 0, 1, 1], [], []>} : vector<16x32xbf16>, vector<32x96xbf16>, vector<16x96xf32> -> vector<16x96xf32>
    %c0_13 = arith.constant 0 : index
    %c0_14 = arith.constant 0 : index
    %c0_15 = arith.constant 0 : index
    %30 = vector.load %arg2[%c0_13, %c0_14, %c0_15] : memref<2x1x96xf32, #tpu.memory_space<vmem>>, vector<1x1x96xf32>
    %31 = vector.shape_cast %30 : vector<1x1x96xf32> to vector<1x96xf32>
    %32 = vector.broadcast %31 : vector<1x96xf32> to vector<16x96xf32>
    %33 = arith.addf %29, %32 : vector<16x96xf32>
    %34 = vector.extract_strided_slice %33 {offsets = [0, 0], sizes = [16, 32], strides = [1, 1]} : vector<16x96xf32> to vector<16x32xf32>
    %35 = vector.shape_cast %34 : vector<16x32xf32> to vector<2x8x32xf32>
    %36 = vector.extract_strided_slice %33 {offsets = [0, 32], sizes = [16, 32], strides = [1, 1]} : vector<16x96xf32> to vector<16x32xf32>
    %37 = vector.shape_cast %36 : vector<16x32xf32> to vector<2x8x32xf32>
    %38 = vector.extract_strided_slice %33 {offsets = [0, 64], sizes = [16, 32], strides = [1, 1]} : vector<16x96xf32> to vector<16x32xf32>
    %39 = vector.shape_cast %38 : vector<16x32xf32> to vector<2x8x32xf32>
    %40 = vector.extract_strided_slice %35 {offsets = [0, 0, 0], sizes = [2, 8, 8], strides = [1, 1, 1]} : vector<2x8x32xf32> to vector<2x8x8xf32>
    %41 = arith.truncf %40 : vector<2x8x8xf32> to vector<2x8x8xbf16>
    %42 = vector.extract_strided_slice %37 {offsets = [0, 0, 0], sizes = [2, 8, 8], strides = [1, 1, 1]} : vector<2x8x32xf32> to vector<2x8x8xf32>
    %43 = arith.truncf %42 : vector<2x8x8xf32> to vector<2x8x8xbf16>
    %44 = vector.extract_strided_slice %39 {offsets = [0, 0, 0], sizes = [2, 8, 8], strides = [1, 1, 1]} : vector<2x8x32xf32> to vector<2x8x8xf32>
    %45 = arith.truncf %44 : vector<2x8x8xf32> to vector<2x8x8xbf16>
    "tpu.trace_start"() <{level = 10 : i32, message = "bqd,bkd->bqk"}> : () -> ()
    %cst_16 = arith.constant dense<0.000000e+00> : vector<2x8x8xf32>
    %46 = tpu.matmul %41, %43, %cst_16 {dimension_numbers = #tpu.dot_dimension_numbers<[2], [2], [1], [1], [0, 0, 0, 1, 1, 1], [0], [0]>} : vector<2x8x8xbf16>, vector<2x8x8xbf16>, vector<2x8x8xf32> -> vector<2x8x8xf32>
    "tpu.trace_stop"() : () -> ()
    %cst_17 = arith.constant 0.353553385 : f32
    %47 = vector.broadcast %cst_17 : f32 to vector<2x8x8xf32>
    %48 = arith.mulf %46, %47 : vector<2x8x8xf32>
    %cst_18 = arith.constant dense<0xFF800000> : vector<2x8xf32>
    %49 = vector.multi_reduction <maximumf>, %48, %cst_18 [2] : vector<2x8x8xf32> to vector<2x8xf32>
    %50 = vector.shape_cast %49 : vector<2x8xf32> to vector<2x8x1xf32>
    %51 = vector.broadcast %50 : vector<2x8x1xf32> to vector<2x8x8xf32>
    %52 = arith.subf %48, %51 : vector<2x8x8xf32>
    %53 = math.exp %52 : vector<2x8x8xf32>
    %cst_19 = arith.constant dense<0.000000e+00> : vector<2x8xf32>
    %54 = vector.multi_reduction <add>, %53, %cst_19 [2] : vector<2x8x8xf32> to vector<2x8xf32>
    %55 = vector.shape_cast %54 : vector<2x8xf32> to vector<2x8x1xf32>
    %56 = tpu.reciprocal %55 {approx = true} : vector<2x8x1xf32> -> vector<2x8x1xf32>
    %57 = vector.broadcast %56 : vector<2x8x1xf32> to vector<2x8x8xf32>
    %58 = arith.mulf %53, %57 : vector<2x8x8xf32>
    %59 = arith.truncf %58 : vector<2x8x8xf32> to vector<2x8x8xbf16>
    "tpu.trace_start"() <{level = 10 : i32, message = "bqk,bkd->bqd"}> : () -> ()
    %cst_20 = arith.constant dense<0.000000e+00> : vector<2x8x8xf32>
    %60 = tpu.matmul %59, %45, %cst_20 {dimension_numbers = #tpu.dot_dimension_numbers<[2], [1], [1], [2], [0, 0, 0, 1, 1, 2], [0], [0]>} : vector<2x8x8xbf16>, vector<2x8x8xbf16>, vector<2x8x8xf32> -> vector<2x8x8xf32>
    "tpu.trace_stop"() : () -> ()
    %61 = vector.extract_strided_slice %35 {offsets = [0, 0, 8], sizes = [2, 8, 8], strides = [1, 1, 1]} : vector<2x8x32xf32> to vector<2x8x8xf32>
    %62 = arith.truncf %61 : vector<2x8x8xf32> to vector<2x8x8xbf16>
    %63 = vector.extract_strided_slice %37 {offsets = [0, 0, 8], sizes = [2, 8, 8], strides = [1, 1, 1]} : vector<2x8x32xf32> to vector<2x8x8xf32>
    %64 = arith.truncf %63 : vector<2x8x8xf32> to vector<2x8x8xbf16>
    %65 = vector.extract_strided_slice %39 {offsets = [0, 0, 8], sizes = [2, 8, 8], strides = [1, 1, 1]} : vector<2x8x32xf32> to vector<2x8x8xf32>
    %66 = arith.truncf %65 : vector<2x8x8xf32> to vector<2x8x8xbf16>
    "tpu.trace_start"() <{level = 10 : i32, message = "bqd,bkd->bqk"}> : () -> ()
    %cst_21 = arith.constant dense<0.000000e+00> : vector<2x8x8xf32>
    %67 = tpu.matmul %62, %64, %cst_21 {dimension_numbers = #tpu.dot_dimension_numbers<[2], [2], [1], [1], [0, 0, 0, 1, 1, 1], [0], [0]>} : vector<2x8x8xbf16>, vector<2x8x8xbf16>, vector<2x8x8xf32> -> vector<2x8x8xf32>
    "tpu.trace_stop"() : () -> ()
    %cst_22 = arith.constant 0.353553385 : f32
    %68 = vector.broadcast %cst_22 : f32 to vector<2x8x8xf32>
    %69 = arith.mulf %67, %68 : vector<2x8x8xf32>
    %cst_23 = arith.constant dense<0xFF800000> : vector<2x8xf32>
    %70 = vector.multi_reduction <maximumf>, %69, %cst_23 [2] : vector<2x8x8xf32> to vector<2x8xf32>
    %71 = vector.shape_cast %70 : vector<2x8xf32> to vector<2x8x1xf32>
    %72 = vector.broadcast %71 : vector<2x8x1xf32> to vector<2x8x8xf32>
    %73 = arith.subf %69, %72 : vector<2x8x8xf32>
    %74 = math.exp %73 : vector<2x8x8xf32>
    %cst_24 = arith.constant dense<0.000000e+00> : vector<2x8xf32>
    %75 = vector.multi_reduction <add>, %74, %cst_24 [2] : vector<2x8x8xf32> to vector<2x8xf32>
    %76 = vector.shape_cast %75 : vector<2x8xf32> to vector<2x8x1xf32>
    %77 = tpu.reciprocal %76 {approx = true} : vector<2x8x1xf32> -> vector<2x8x1xf32>
    %78 = vector.broadcast %77 : vector<2x8x1xf32> to vector<2x8x8xf32>
    %79 = arith.mulf %74, %78 : vector<2x8x8xf32>
    %80 = arith.truncf %79 : vector<2x8x8xf32> to vector<2x8x8xbf16>
    "tpu.trace_start"() <{level = 10 : i32, message = "bqk,bkd->bqd"}> : () -> ()
    %cst_25 = arith.constant dense<0.000000e+00> : vector<2x8x8xf32>
    %81 = tpu.matmul %80, %66, %cst_25 {dimension_numbers = #tpu.dot_dimension_numbers<[2], [1], [1], [2], [0, 0, 0, 1, 1, 2], [0], [0]>} : vector<2x8x8xbf16>, vector<2x8x8xbf16>, vector<2x8x8xf32> -> vector<2x8x8xf32>
    "tpu.trace_stop"() : () -> ()
    %82 = vector.extract_strided_slice %35 {offsets = [0, 0, 16], sizes = [2, 8, 8], strides = [1, 1, 1]} : vector<2x8x32xf32> to vector<2x8x8xf32>
    %83 = arith.truncf %82 : vector<2x8x8xf32> to vector<2x8x8xbf16>
    %84 = vector.extract_strided_slice %37 {offsets = [0, 0, 16], sizes = [2, 8, 8], strides = [1, 1, 1]} : vector<2x8x32xf32> to vector<2x8x8xf32>
    %85 = arith.truncf %84 : vector<2x8x8xf32> to vector<2x8x8xbf16>
    %86 = vector.extract_strided_slice %39 {offsets = [0, 0, 16], sizes = [2, 8, 8], strides = [1, 1, 1]} : vector<2x8x32xf32> to vector<2x8x8xf32>
    %87 = arith.truncf %86 : vector<2x8x8xf32> to vector<2x8x8xbf16>
    "tpu.trace_start"() <{level = 10 : i32, message = "bqd,bkd->bqk"}> : () -> ()
    %cst_26 = arith.constant dense<0.000000e+00> : vector<2x8x8xf32>
    %88 = tpu.matmul %83, %85, %cst_26 {dimension_numbers = #tpu.dot_dimension_numbers<[2], [2], [1], [1], [0, 0, 0, 1, 1, 1], [0], [0]>} : vector<2x8x8xbf16>, vector<2x8x8xbf16>, vector<2x8x8xf32> -> vector<2x8x8xf32>
    "tpu.trace_stop"() : () -> ()
    %cst_27 = arith.constant 0.353553385 : f32
    %89 = vector.broadcast %cst_27 : f32 to vector<2x8x8xf32>
    %90 = arith.mulf %88, %89 : vector<2x8x8xf32>
    %cst_28 = arith.constant dense<0xFF800000> : vector<2x8xf32>
    %91 = vector.multi_reduction <maximumf>, %90, %cst_28 [2] : vector<2x8x8xf32> to vector<2x8xf32>
    %92 = vector.shape_cast %91 : vector<2x8xf32> to vector<2x8x1xf32>
    %93 = vector.broadcast %92 : vector<2x8x1xf32> to vector<2x8x8xf32>
    %94 = arith.subf %90, %93 : vector<2x8x8xf32>
    %95 = math.exp %94 : vector<2x8x8xf32>
    %cst_29 = arith.constant dense<0.000000e+00> : vector<2x8xf32>
    %96 = vector.multi_reduction <add>, %95, %cst_29 [2] : vector<2x8x8xf32> to vector<2x8xf32>
    %97 = vector.shape_cast %96 : vector<2x8xf32> to vector<2x8x1xf32>
    %98 = tpu.reciprocal %97 {approx = true} : vector<2x8x1xf32> -> vector<2x8x1xf32>
    %99 = vector.broadcast %98 : vector<2x8x1xf32> to vector<2x8x8xf32>
    %100 = arith.mulf %95, %99 : vector<2x8x8xf32>
    %101 = arith.truncf %100 : vector<2x8x8xf32> to vector<2x8x8xbf16>
    "tpu.trace_start"() <{level = 10 : i32, message = "bqk,bkd->bqd"}> : () -> ()
    %cst_30 = arith.constant dense<0.000000e+00> : vector<2x8x8xf32>
    %102 = tpu.matmul %101, %87, %cst_30 {dimension_numbers = #tpu.dot_dimension_numbers<[2], [1], [1], [2], [0, 0, 0, 1, 1, 2], [0], [0]>} : vector<2x8x8xbf16>, vector<2x8x8xbf16>, vector<2x8x8xf32> -> vector<2x8x8xf32>
    "tpu.trace_stop"() : () -> ()
    %103 = vector.extract_strided_slice %35 {offsets = [0, 0, 24], sizes = [2, 8, 8], strides = [1, 1, 1]} : vector<2x8x32xf32> to vector<2x8x8xf32>
    %104 = arith.truncf %103 : vector<2x8x8xf32> to vector<2x8x8xbf16>
    %105 = vector.extract_strided_slice %37 {offsets = [0, 0, 24], sizes = [2, 8, 8], strides = [1, 1, 1]} : vector<2x8x32xf32> to vector<2x8x8xf32>
    %106 = arith.truncf %105 : vector<2x8x8xf32> to vector<2x8x8xbf16>
    %107 = vector.extract_strided_slice %39 {offsets = [0, 0, 24], sizes = [2, 8, 8], strides = [1, 1, 1]} : vector<2x8x32xf32> to vector<2x8x8xf32>
    %108 = arith.truncf %107 : vector<2x8x8xf32> to vector<2x8x8xbf16>
    "tpu.trace_start"() <{level = 10 : i32, message = "bqd,bkd->bqk"}> : () -> ()
    %cst_31 = arith.constant dense<0.000000e+00> : vector<2x8x8xf32>
    %109 = tpu.matmul %104, %106, %cst_31 {dimension_numbers = #tpu.dot_dimension_numbers<[2], [2], [1], [1], [0, 0, 0, 1, 1, 1], [0], [0]>} : vector<2x8x8xbf16>, vector<2x8x8xbf16>, vector<2x8x8xf32> -> vector<2x8x8xf32>
    "tpu.trace_stop"() : () -> ()
    %cst_32 = arith.constant 0.353553385 : f32
    %110 = vector.broadcast %cst_32 : f32 to vector<2x8x8xf32>
    %111 = arith.mulf %109, %110 : vector<2x8x8xf32>
    %cst_33 = arith.constant dense<0xFF800000> : vector<2x8xf32>
    %112 = vector.multi_reduction <maximumf>, %111, %cst_33 [2] : vector<2x8x8xf32> to vector<2x8xf32>
    %113 = vector.shape_cast %112 : vector<2x8xf32> to vector<2x8x1xf32>
    %114 = vector.broadcast %113 : vector<2x8x1xf32> to vector<2x8x8xf32>
    %115 = arith.subf %111, %114 : vector<2x8x8xf32>
    %116 = math.exp %115 : vector<2x8x8xf32>
    %cst_34 = arith.constant dense<0.000000e+00> : vector<2x8xf32>
    %117 = vector.multi_reduction <add>, %116, %cst_34 [2] : vector<2x8x8xf32> to vector<2x8xf32>
    %118 = vector.shape_cast %117 : vector<2x8xf32> to vector<2x8x1xf32>
    %119 = tpu.reciprocal %118 {approx = true} : vector<2x8x1xf32> -> vector<2x8x1xf32>
    %120 = vector.broadcast %119 : vector<2x8x1xf32> to vector<2x8x8xf32>
    %121 = arith.mulf %116, %120 : vector<2x8x8xf32>
    %122 = arith.truncf %121 : vector<2x8x8xf32> to vector<2x8x8xbf16>
    "tpu.trace_start"() <{level = 10 : i32, message = "bqk,bkd->bqd"}> : () -> ()
    %cst_35 = arith.constant dense<0.000000e+00> : vector<2x8x8xf32>
    %123 = tpu.matmul %122, %108, %cst_35 {dimension_numbers = #tpu.dot_dimension_numbers<[2], [1], [1], [2], [0, 0, 0, 1, 1, 2], [0], [0]>} : vector<2x8x8xbf16>, vector<2x8x8xbf16>, vector<2x8x8xf32> -> vector<2x8x8xf32>
    "tpu.trace_stop"() : () -> ()
    %124 = tpu.concatenate %60, %81, %102, %123 in 2 : vector<2x8x8xf32>, vector<2x8x8xf32>, vector<2x8x8xf32>, vector<2x8x8xf32> -> vector<2x8x32xf32>
    %125 = vector.shape_cast %124 : vector<2x8x32xf32> to vector<16x32xf32>
    %c0_36 = arith.constant 0 : index
    %c0_37 = arith.constant 0 : index
    %c0_38 = arith.constant 0 : index
    %126 = vector.load %arg3[%c0_36, %c0_37, %c0_38] : memref<2x32x32xbf16, #tpu.memory_space<vmem>>, vector<1x32x32xbf16>
    %127 = vector.shape_cast %126 : vector<1x32x32xbf16> to vector<32x32xbf16>
    %128 = arith.truncf %125 : vector<16x32xf32> to vector<16x32xbf16>
    %cst_39 = arith.constant dense<0.000000e+00> : vector<16x32xf32>
    %129 = tpu.matmul %128, %127, %cst_39 {dimension_numbers = #tpu.dot_dimension_numbers<[1], [0], [0], [1], [0, 0, 1, 1], [], []>} : vector<16x32xbf16>, vector<32x32xbf16>, vector<16x32xf32> -> vector<16x32xf32>
    %130 = arith.addf %0, %129 : vector<16x32xf32>
    %c0_40 = arith.constant 0 : index
    %c0_41 = arith.constant 0 : index
    %c0_42 = arith.constant 0 : index
    %131 = vector.load %arg4[%c0_40, %c0_41, %c0_42] : memref<2x1x32xf32, #tpu.memory_space<vmem>>, vector<1x1x32xf32>
    %132 = vector.shape_cast %131 : vector<1x1x32xf32> to vector<1x32xf32>
    %133 = vector.broadcast %132 : vector<1x32xf32> to vector<16x32xf32>
    %134 = arith.addf %130, %133 : vector<16x32xf32>
    %135 = vector.extract_strided_slice %1 {offsets = [1, 0], sizes = [1, 32], strides = [1, 1]} : vector<5x32xf32> to vector<1x32xf32>
    %136 = vector.extract_strided_slice %2 {offsets = [1, 0], sizes = [1, 32], strides = [1, 1]} : vector<5x32xf32> to vector<1x32xf32>
    %cst_43 = arith.constant dense<0.000000e+00> : vector<16xf32>
    %137 = vector.multi_reduction <add>, %134, %cst_43 [1] : vector<16x32xf32> to vector<16xf32>
    %138 = vector.shape_cast %137 : vector<16xf32> to vector<16x1xf32>
    %cst_44 = arith.constant 3.200000e+01 : f32
    %139 = vector.broadcast %cst_44 : f32 to vector<16x1xf32>
    %140 = arith.divf %138, %139 : vector<16x1xf32>
    %141 = vector.broadcast %140 : vector<16x1xf32> to vector<16x32xf32>
    %142 = arith.subf %134, %141 : vector<16x32xf32>
    %143 = arith.mulf %142, %142 : vector<16x32xf32>
    %cst_45 = arith.constant dense<0.000000e+00> : vector<16xf32>
    %144 = vector.multi_reduction <add>, %143, %cst_45 [1] : vector<16x32xf32> to vector<16xf32>
    %145 = vector.shape_cast %144 : vector<16xf32> to vector<16x1xf32>
    %cst_46 = arith.constant 0.0322580636 : f32
    %146 = vector.broadcast %cst_46 : f32 to vector<16x1xf32>
    %147 = arith.mulf %145, %146 : vector<16x1xf32>
    %148 = math.sqrt %147 : vector<16x1xf32>
    %cst_47 = arith.constant 9.99999997E-7 : f32
    %149 = vector.broadcast %cst_47 : f32 to vector<16x1xf32>
    %150 = arith.addf %148, %149 : vector<16x1xf32>
    %151 = tpu.reciprocal %150 {approx = true} : vector<16x1xf32> -> vector<16x1xf32>
    %152 = vector.broadcast %135 : vector<1x32xf32> to vector<16x32xf32>
    %153 = arith.mulf %152, %142 : vector<16x32xf32>
    %154 = vector.broadcast %151 : vector<16x1xf32> to vector<16x32xf32>
    %155 = arith.mulf %153, %154 : vector<16x32xf32>
    %156 = vector.broadcast %136 : vector<1x32xf32> to vector<16x32xf32>
    %157 = arith.addf %155, %156 : vector<16x32xf32>
    %c0_48 = arith.constant 0 : index
    %c0_49 = arith.constant 0 : index
    %c0_50 = arith.constant 0 : index
    %158 = vector.load %arg5[%c0_48, %c0_49, %c0_50] : memref<2x32x64xbf16, #tpu.memory_space<vmem>>, vector<1x32x64xbf16>
    %159 = vector.shape_cast %158 : vector<1x32x64xbf16> to vector<32x64xbf16>
    %160 = arith.truncf %157 : vector<16x32xf32> to vector<16x32xbf16>
    %cst_51 = arith.constant dense<0.000000e+00> : vector<16x64xf32>
    %161 = tpu.matmul %160, %159, %cst_51 {dimension_numbers = #tpu.dot_dimension_numbers<[1], [0], [0], [1], [0, 0, 1, 1], [], []>} : vector<16x32xbf16>, vector<32x64xbf16>, vector<16x64xf32> -> vector<16x64xf32>
    %c0_52 = arith.constant 0 : index
    %c0_53 = arith.constant 0 : index
    %c0_54 = arith.constant 0 : index
    %162 = vector.load %arg6[%c0_52, %c0_53, %c0_54] : memref<2x1x64xf32, #tpu.memory_space<vmem>>, vector<1x1x64xf32>
    %163 = vector.shape_cast %162 : vector<1x1x64xf32> to vector<1x64xf32>
    %164 = vector.broadcast %163 : vector<1x64xf32> to vector<16x64xf32>
    %165 = arith.addf %161, %164 : vector<16x64xf32>
    %cst_55 = arith.constant 0.000000e+00 : f32
    %166 = vector.broadcast %cst_55 : f32 to vector<16x64xf32>
    %167 = arith.maximumf %165, %166 : vector<16x64xf32>
    %c0_56 = arith.constant 0 : index
    %c0_57 = arith.constant 0 : index
    %c0_58 = arith.constant 0 : index
    %168 = vector.load %arg7[%c0_56, %c0_57, %c0_58] : memref<2x64x32xbf16, #tpu.memory_space<vmem>>, vector<1x64x32xbf16>
    %169 = vector.shape_cast %168 : vector<1x64x32xbf16> to vector<64x32xbf16>
    %170 = arith.truncf %167 : vector<16x64xf32> to vector<16x64xbf16>
    %cst_59 = arith.constant dense<0.000000e+00> : vector<16x32xf32>
    %171 = tpu.matmul %170, %169, %cst_59 {dimension_numbers = #tpu.dot_dimension_numbers<[1], [0], [0], [1], [0, 0, 1, 1], [], []>} : vector<16x64xbf16>, vector<64x32xbf16>, vector<16x32xf32> -> vector<16x32xf32>
    %172 = arith.addf %134, %171 : vector<16x32xf32>
    %c0_60 = arith.constant 0 : index
    %c0_61 = arith.constant 0 : index
    %c0_62 = arith.constant 0 : index
    %173 = vector.load %arg8[%c0_60, %c0_61, %c0_62] : memref<2x1x32xf32, #tpu.memory_space<vmem>>, vector<1x1x32xf32>
    %174 = vector.shape_cast %173 : vector<1x1x32xf32> to vector<1x32xf32>
    %175 = vector.broadcast %174 : vector<1x32xf32> to vector<16x32xf32>
    %176 = arith.addf %172, %175 : vector<16x32xf32>
    %177 = vector.extract_strided_slice %1 {offsets = [2, 0], sizes = [1, 32], strides = [1, 1]} : vector<5x32xf32> to vector<1x32xf32>
    %178 = vector.extract_strided_slice %2 {offsets = [2, 0], sizes = [1, 32], strides = [1, 1]} : vector<5x32xf32> to vector<1x32xf32>
    %cst_63 = arith.constant dense<0.000000e+00> : vector<16xf32>
    %179 = vector.multi_reduction <add>, %176, %cst_63 [1] : vector<16x32xf32> to vector<16xf32>
    %180 = vector.shape_cast %179 : vector<16xf32> to vector<16x1xf32>
    %cst_64 = arith.constant 3.200000e+01 : f32
    %181 = vector.broadcast %cst_64 : f32 to vector<16x1xf32>
    %182 = arith.divf %180, %181 : vector<16x1xf32>
    %183 = vector.broadcast %182 : vector<16x1xf32> to vector<16x32xf32>
    %184 = arith.subf %176, %183 : vector<16x32xf32>
    %185 = arith.mulf %184, %184 : vector<16x32xf32>
    %cst_65 = arith.constant dense<0.000000e+00> : vector<16xf32>
    %186 = vector.multi_reduction <add>, %185, %cst_65 [1] : vector<16x32xf32> to vector<16xf32>
    %187 = vector.shape_cast %186 : vector<16xf32> to vector<16x1xf32>
    %cst_66 = arith.constant 0.0322580636 : f32
    %188 = vector.broadcast %cst_66 : f32 to vector<16x1xf32>
    %189 = arith.mulf %187, %188 : vector<16x1xf32>
    %190 = math.sqrt %189 : vector<16x1xf32>
    %cst_67 = arith.constant 9.99999997E-7 : f32
    %191 = vector.broadcast %cst_67 : f32 to vector<16x1xf32>
    %192 = arith.addf %190, %191 : vector<16x1xf32>
    %193 = tpu.reciprocal %192 {approx = true} : vector<16x1xf32> -> vector<16x1xf32>
    %194 = vector.broadcast %177 : vector<1x32xf32> to vector<16x32xf32>
    %195 = arith.mulf %194, %184 : vector<16x32xf32>
    %196 = vector.broadcast %193 : vector<16x1xf32> to vector<16x32xf32>
    %197 = arith.mulf %195, %196 : vector<16x32xf32>
    %198 = vector.broadcast %178 : vector<1x32xf32> to vector<16x32xf32>
    %199 = arith.addf %197, %198 : vector<16x32xf32>
    %c1 = arith.constant 1 : index
    %c0_68 = arith.constant 0 : index
    %c0_69 = arith.constant 0 : index
    %200 = vector.load %arg1[%c1, %c0_68, %c0_69] : memref<2x32x96xbf16, #tpu.memory_space<vmem>>, vector<1x32x96xbf16>
    %201 = vector.shape_cast %200 : vector<1x32x96xbf16> to vector<32x96xbf16>
    %202 = arith.truncf %199 : vector<16x32xf32> to vector<16x32xbf16>
    %cst_70 = arith.constant dense<0.000000e+00> : vector<16x96xf32>
    %203 = tpu.matmul %202, %201, %cst_70 {dimension_numbers = #tpu.dot_dimension_numbers<[1], [0], [0], [1], [0, 0, 1, 1], [], []>} : vector<16x32xbf16>, vector<32x96xbf16>, vector<16x96xf32> -> vector<16x96xf32>
    %c1_71 = arith.constant 1 : index
    %c0_72 = arith.constant 0 : index
    %c0_73 = arith.constant 0 : index
    %204 = vector.load %arg2[%c1_71, %c0_72, %c0_73] : memref<2x1x96xf32, #tpu.memory_space<vmem>>, vector<1x1x96xf32>
    %205 = vector.shape_cast %204 : vector<1x1x96xf32> to vector<1x96xf32>
    %206 = vector.broadcast %205 : vector<1x96xf32> to vector<16x96xf32>
    %207 = arith.addf %203, %206 : vector<16x96xf32>
    %208 = vector.extract_strided_slice %207 {offsets = [0, 0], sizes = [16, 32], strides = [1, 1]} : vector<16x96xf32> to vector<16x32xf32>
    %209 = vector.shape_cast %208 : vector<16x32xf32> to vector<2x8x32xf32>
    %210 = vector.extract_strided_slice %207 {offsets = [0, 32], sizes = [16, 32], strides = [1, 1]} : vector<16x96xf32> to vector<16x32xf32>
    %211 = vector.shape_cast %210 : vector<16x32xf32> to vector<2x8x32xf32>
    %212 = vector.extract_strided_slice %207 {offsets = [0, 64], sizes = [16, 32], strides = [1, 1]} : vector<16x96xf32> to vector<16x32xf32>
    %213 = vector.shape_cast %212 : vector<16x32xf32> to vector<2x8x32xf32>
    %214 = vector.extract_strided_slice %209 {offsets = [0, 0, 0], sizes = [2, 8, 8], strides = [1, 1, 1]} : vector<2x8x32xf32> to vector<2x8x8xf32>
    %215 = arith.truncf %214 : vector<2x8x8xf32> to vector<2x8x8xbf16>
    %216 = vector.extract_strided_slice %211 {offsets = [0, 0, 0], sizes = [2, 8, 8], strides = [1, 1, 1]} : vector<2x8x32xf32> to vector<2x8x8xf32>
    %217 = arith.truncf %216 : vector<2x8x8xf32> to vector<2x8x8xbf16>
    %218 = vector.extract_strided_slice %213 {offsets = [0, 0, 0], sizes = [2, 8, 8], strides = [1, 1, 1]} : vector<2x8x32xf32> to vector<2x8x8xf32>
    %219 = arith.truncf %218 : vector<2x8x8xf32> to vector<2x8x8xbf16>
    "tpu.trace_start"() <{level = 10 : i32, message = "bqd,bkd->bqk"}> : () -> ()
    %cst_74 = arith.constant dense<0.000000e+00> : vector<2x8x8xf32>
    %220 = tpu.matmul %215, %217, %cst_74 {dimension_numbers = #tpu.dot_dimension_numbers<[2], [2], [1], [1], [0, 0, 0, 1, 1, 1], [0], [0]>} : vector<2x8x8xbf16>, vector<2x8x8xbf16>, vector<2x8x8xf32> -> vector<2x8x8xf32>
    "tpu.trace_stop"() : () -> ()
    %cst_75 = arith.constant 0.353553385 : f32
    %221 = vector.broadcast %cst_75 : f32 to vector<2x8x8xf32>
    %222 = arith.mulf %220, %221 : vector<2x8x8xf32>
    %cst_76 = arith.constant dense<0xFF800000> : vector<2x8xf32>
    %223 = vector.multi_reduction <maximumf>, %222, %cst_76 [2] : vector<2x8x8xf32> to vector<2x8xf32>
    %224 = vector.shape_cast %223 : vector<2x8xf32> to vector<2x8x1xf32>
    %225 = vector.broadcast %224 : vector<2x8x1xf32> to vector<2x8x8xf32>
    %226 = arith.subf %222, %225 : vector<2x8x8xf32>
    %227 = math.exp %226 : vector<2x8x8xf32>
    %cst_77 = arith.constant dense<0.000000e+00> : vector<2x8xf32>
    %228 = vector.multi_reduction <add>, %227, %cst_77 [2] : vector<2x8x8xf32> to vector<2x8xf32>
    %229 = vector.shape_cast %228 : vector<2x8xf32> to vector<2x8x1xf32>
    %230 = tpu.reciprocal %229 {approx = true} : vector<2x8x1xf32> -> vector<2x8x1xf32>
    %231 = vector.broadcast %230 : vector<2x8x1xf32> to vector<2x8x8xf32>
    %232 = arith.mulf %227, %231 : vector<2x8x8xf32>
    %233 = arith.truncf %232 : vector<2x8x8xf32> to vector<2x8x8xbf16>
    "tpu.trace_start"() <{level = 10 : i32, message = "bqk,bkd->bqd"}> : () -> ()
    %cst_78 = arith.constant dense<0.000000e+00> : vector<2x8x8xf32>
    %234 = tpu.matmul %233, %219, %cst_78 {dimension_numbers = #tpu.dot_dimension_numbers<[2], [1], [1], [2], [0, 0, 0, 1, 1, 2], [0], [0]>} : vector<2x8x8xbf16>, vector<2x8x8xbf16>, vector<2x8x8xf32> -> vector<2x8x8xf32>
    "tpu.trace_stop"() : () -> ()
    %235 = vector.extract_strided_slice %209 {offsets = [0, 0, 8], sizes = [2, 8, 8], strides = [1, 1, 1]} : vector<2x8x32xf32> to vector<2x8x8xf32>
    %236 = arith.truncf %235 : vector<2x8x8xf32> to vector<2x8x8xbf16>
    %237 = vector.extract_strided_slice %211 {offsets = [0, 0, 8], sizes = [2, 8, 8], strides = [1, 1, 1]} : vector<2x8x32xf32> to vector<2x8x8xf32>
    %238 = arith.truncf %237 : vector<2x8x8xf32> to vector<2x8x8xbf16>
    %239 = vector.extract_strided_slice %213 {offsets = [0, 0, 8], sizes = [2, 8, 8], strides = [1, 1, 1]} : vector<2x8x32xf32> to vector<2x8x8xf32>
    %240 = arith.truncf %239 : vector<2x8x8xf32> to vector<2x8x8xbf16>
    "tpu.trace_start"() <{level = 10 : i32, message = "bqd,bkd->bqk"}> : () -> ()
    %cst_79 = arith.constant dense<0.000000e+00> : vector<2x8x8xf32>
    %241 = tpu.matmul %236, %238, %cst_79 {dimension_numbers = #tpu.dot_dimension_numbers<[2], [2], [1], [1], [0, 0, 0, 1, 1, 1], [0], [0]>} : vector<2x8x8xbf16>, vector<2x8x8xbf16>, vector<2x8x8xf32> -> vector<2x8x8xf32>
    "tpu.trace_stop"() : () -> ()
    %cst_80 = arith.constant 0.353553385 : f32
    %242 = vector.broadcast %cst_80 : f32 to vector<2x8x8xf32>
    %243 = arith.mulf %241, %242 : vector<2x8x8xf32>
    %cst_81 = arith.constant dense<0xFF800000> : vector<2x8xf32>
    %244 = vector.multi_reduction <maximumf>, %243, %cst_81 [2] : vector<2x8x8xf32> to vector<2x8xf32>
    %245 = vector.shape_cast %244 : vector<2x8xf32> to vector<2x8x1xf32>
    %246 = vector.broadcast %245 : vector<2x8x1xf32> to vector<2x8x8xf32>
    %247 = arith.subf %243, %246 : vector<2x8x8xf32>
    %248 = math.exp %247 : vector<2x8x8xf32>
    %cst_82 = arith.constant dense<0.000000e+00> : vector<2x8xf32>
    %249 = vector.multi_reduction <add>, %248, %cst_82 [2] : vector<2x8x8xf32> to vector<2x8xf32>
    %250 = vector.shape_cast %249 : vector<2x8xf32> to vector<2x8x1xf32>
    %251 = tpu.reciprocal %250 {approx = true} : vector<2x8x1xf32> -> vector<2x8x1xf32>
    %252 = vector.broadcast %251 : vector<2x8x1xf32> to vector<2x8x8xf32>
    %253 = arith.mulf %248, %252 : vector<2x8x8xf32>
    %254 = arith.truncf %253 : vector<2x8x8xf32> to vector<2x8x8xbf16>
    "tpu.trace_start"() <{level = 10 : i32, message = "bqk,bkd->bqd"}> : () -> ()
    %cst_83 = arith.constant dense<0.000000e+00> : vector<2x8x8xf32>
    %255 = tpu.matmul %254, %240, %cst_83 {dimension_numbers = #tpu.dot_dimension_numbers<[2], [1], [1], [2], [0, 0, 0, 1, 1, 2], [0], [0]>} : vector<2x8x8xbf16>, vector<2x8x8xbf16>, vector<2x8x8xf32> -> vector<2x8x8xf32>
    "tpu.trace_stop"() : () -> ()
    %256 = vector.extract_strided_slice %209 {offsets = [0, 0, 16], sizes = [2, 8, 8], strides = [1, 1, 1]} : vector<2x8x32xf32> to vector<2x8x8xf32>
    %257 = arith.truncf %256 : vector<2x8x8xf32> to vector<2x8x8xbf16>
    %258 = vector.extract_strided_slice %211 {offsets = [0, 0, 16], sizes = [2, 8, 8], strides = [1, 1, 1]} : vector<2x8x32xf32> to vector<2x8x8xf32>
    %259 = arith.truncf %258 : vector<2x8x8xf32> to vector<2x8x8xbf16>
    %260 = vector.extract_strided_slice %213 {offsets = [0, 0, 16], sizes = [2, 8, 8], strides = [1, 1, 1]} : vector<2x8x32xf32> to vector<2x8x8xf32>
    %261 = arith.truncf %260 : vector<2x8x8xf32> to vector<2x8x8xbf16>
    "tpu.trace_start"() <{level = 10 : i32, message = "bqd,bkd->bqk"}> : () -> ()
    %cst_84 = arith.constant dense<0.000000e+00> : vector<2x8x8xf32>
    %262 = tpu.matmul %257, %259, %cst_84 {dimension_numbers = #tpu.dot_dimension_numbers<[2], [2], [1], [1], [0, 0, 0, 1, 1, 1], [0], [0]>} : vector<2x8x8xbf16>, vector<2x8x8xbf16>, vector<2x8x8xf32> -> vector<2x8x8xf32>
    "tpu.trace_stop"() : () -> ()
    %cst_85 = arith.constant 0.353553385 : f32
    %263 = vector.broadcast %cst_85 : f32 to vector<2x8x8xf32>
    %264 = arith.mulf %262, %263 : vector<2x8x8xf32>
    %cst_86 = arith.constant dense<0xFF800000> : vector<2x8xf32>
    %265 = vector.multi_reduction <maximumf>, %264, %cst_86 [2] : vector<2x8x8xf32> to vector<2x8xf32>
    %266 = vector.shape_cast %265 : vector<2x8xf32> to vector<2x8x1xf32>
    %267 = vector.broadcast %266 : vector<2x8x1xf32> to vector<2x8x8xf32>
    %268 = arith.subf %264, %267 : vector<2x8x8xf32>
    %269 = math.exp %268 : vector<2x8x8xf32>
    %cst_87 = arith.constant dense<0.000000e+00> : vector<2x8xf32>
    %270 = vector.multi_reduction <add>, %269, %cst_87 [2] : vector<2x8x8xf32> to vector<2x8xf32>
    %271 = vector.shape_cast %270 : vector<2x8xf32> to vector<2x8x1xf32>
    %272 = tpu.reciprocal %271 {approx = true} : vector<2x8x1xf32> -> vector<2x8x1xf32>
    %273 = vector.broadcast %272 : vector<2x8x1xf32> to vector<2x8x8xf32>
    %274 = arith.mulf %269, %273 : vector<2x8x8xf32>
    %275 = arith.truncf %274 : vector<2x8x8xf32> to vector<2x8x8xbf16>
    "tpu.trace_start"() <{level = 10 : i32, message = "bqk,bkd->bqd"}> : () -> ()
    %cst_88 = arith.constant dense<0.000000e+00> : vector<2x8x8xf32>
    %276 = tpu.matmul %275, %261, %cst_88 {dimension_numbers = #tpu.dot_dimension_numbers<[2], [1], [1], [2], [0, 0, 0, 1, 1, 2], [0], [0]>} : vector<2x8x8xbf16>, vector<2x8x8xbf16>, vector<2x8x8xf32> -> vector<2x8x8xf32>
    "tpu.trace_stop"() : () -> ()
    %277 = vector.extract_strided_slice %209 {offsets = [0, 0, 24], sizes = [2, 8, 8], strides = [1, 1, 1]} : vector<2x8x32xf32> to vector<2x8x8xf32>
    %278 = arith.truncf %277 : vector<2x8x8xf32> to vector<2x8x8xbf16>
    %279 = vector.extract_strided_slice %211 {offsets = [0, 0, 24], sizes = [2, 8, 8], strides = [1, 1, 1]} : vector<2x8x32xf32> to vector<2x8x8xf32>
    %280 = arith.truncf %279 : vector<2x8x8xf32> to vector<2x8x8xbf16>
    %281 = vector.extract_strided_slice %213 {offsets = [0, 0, 24], sizes = [2, 8, 8], strides = [1, 1, 1]} : vector<2x8x32xf32> to vector<2x8x8xf32>
    %282 = arith.truncf %281 : vector<2x8x8xf32> to vector<2x8x8xbf16>
    "tpu.trace_start"() <{level = 10 : i32, message = "bqd,bkd->bqk"}> : () -> ()
    %cst_89 = arith.constant dense<0.000000e+00> : vector<2x8x8xf32>
    %283 = tpu.matmul %278, %280, %cst_89 {dimension_numbers = #tpu.dot_dimension_numbers<[2], [2], [1], [1], [0, 0, 0, 1, 1, 1], [0], [0]>} : vector<2x8x8xbf16>, vector<2x8x8xbf16>, vector<2x8x8xf32> -> vector<2x8x8xf32>
    "tpu.trace_stop"() : () -> ()
    %cst_90 = arith.constant 0.353553385 : f32
    %284 = vector.broadcast %cst_90 : f32 to vector<2x8x8xf32>
    %285 = arith.mulf %283, %284 : vector<2x8x8xf32>
    %cst_91 = arith.constant dense<0xFF800000> : vector<2x8xf32>
    %286 = vector.multi_reduction <maximumf>, %285, %cst_91 [2] : vector<2x8x8xf32> to vector<2x8xf32>
    %287 = vector.shape_cast %286 : vector<2x8xf32> to vector<2x8x1xf32>
    %288 = vector.broadcast %287 : vector<2x8x1xf32> to vector<2x8x8xf32>
    %289 = arith.subf %285, %288 : vector<2x8x8xf32>
    %290 = math.exp %289 : vector<2x8x8xf32>
    %cst_92 = arith.constant dense<0.000000e+00> : vector<2x8xf32>
    %291 = vector.multi_reduction <add>, %290, %cst_92 [2] : vector<2x8x8xf32> to vector<2x8xf32>
    %292 = vector.shape_cast %291 : vector<2x8xf32> to vector<2x8x1xf32>
    %293 = tpu.reciprocal %292 {approx = true} : vector<2x8x1xf32> -> vector<2x8x1xf32>
    %294 = vector.broadcast %293 : vector<2x8x1xf32> to vector<2x8x8xf32>
    %295 = arith.mulf %290, %294 : vector<2x8x8xf32>
    %296 = arith.truncf %295 : vector<2x8x8xf32> to vector<2x8x8xbf16>
    "tpu.trace_start"() <{level = 10 : i32, message = "bqk,bkd->bqd"}> : () -> ()
    %cst_93 = arith.constant dense<0.000000e+00> : vector<2x8x8xf32>
    %297 = tpu.matmul %296, %282, %cst_93 {dimension_numbers = #tpu.dot_dimension_numbers<[2], [1], [1], [2], [0, 0, 0, 1, 1, 2], [0], [0]>} : vector<2x8x8xbf16>, vector<2x8x8xbf16>, vector<2x8x8xf32> -> vector<2x8x8xf32>
    "tpu.trace_stop"() : () -> ()
    %298 = tpu.concatenate %234, %255, %276, %297 in 2 : vector<2x8x8xf32>, vector<2x8x8xf32>, vector<2x8x8xf32>, vector<2x8x8xf32> -> vector<2x8x32xf32>
    %299 = vector.shape_cast %298 : vector<2x8x32xf32> to vector<16x32xf32>
    %c1_94 = arith.constant 1 : index
    %c0_95 = arith.constant 0 : index
    %c0_96 = arith.constant 0 : index
    %300 = vector.load %arg3[%c1_94, %c0_95, %c0_96] : memref<2x32x32xbf16, #tpu.memory_space<vmem>>, vector<1x32x32xbf16>
    %301 = vector.shape_cast %300 : vector<1x32x32xbf16> to vector<32x32xbf16>
    %302 = arith.truncf %299 : vector<16x32xf32> to vector<16x32xbf16>
    %cst_97 = arith.constant dense<0.000000e+00> : vector<16x32xf32>
    %303 = tpu.matmul %302, %301, %cst_97 {dimension_numbers = #tpu.dot_dimension_numbers<[1], [0], [0], [1], [0, 0, 1, 1], [], []>} : vector<16x32xbf16>, vector<32x32xbf16>, vector<16x32xf32> -> vector<16x32xf32>
    %304 = arith.addf %176, %303 : vector<16x32xf32>
    %c1_98 = arith.constant 1 : index
    %c0_99 = arith.constant 0 : index
    %c0_100 = arith.constant 0 : index
    %305 = vector.load %arg4[%c1_98, %c0_99, %c0_100] : memref<2x1x32xf32, #tpu.memory_space<vmem>>, vector<1x1x32xf32>
    %306 = vector.shape_cast %305 : vector<1x1x32xf32> to vector<1x32xf32>
    %307 = vector.broadcast %306 : vector<1x32xf32> to vector<16x32xf32>
    %308 = arith.addf %304, %307 : vector<16x32xf32>
    %309 = vector.extract_strided_slice %1 {offsets = [3, 0], sizes = [1, 32], strides = [1, 1]} : vector<5x32xf32> to vector<1x32xf32>
    %310 = vector.extract_strided_slice %2 {offsets = [3, 0], sizes = [1, 32], strides = [1, 1]} : vector<5x32xf32> to vector<1x32xf32>
    %cst_101 = arith.constant dense<0.000000e+00> : vector<16xf32>
    %311 = vector.multi_reduction <add>, %308, %cst_101 [1] : vector<16x32xf32> to vector<16xf32>
    %312 = vector.shape_cast %311 : vector<16xf32> to vector<16x1xf32>
    %cst_102 = arith.constant 3.200000e+01 : f32
    %313 = vector.broadcast %cst_102 : f32 to vector<16x1xf32>
    %314 = arith.divf %312, %313 : vector<16x1xf32>
    %315 = vector.broadcast %314 : vector<16x1xf32> to vector<16x32xf32>
    %316 = arith.subf %308, %315 : vector<16x32xf32>
    %317 = arith.mulf %316, %316 : vector<16x32xf32>
    %cst_103 = arith.constant dense<0.000000e+00> : vector<16xf32>
    %318 = vector.multi_reduction <add>, %317, %cst_103 [1] : vector<16x32xf32> to vector<16xf32>
    %319 = vector.shape_cast %318 : vector<16xf32> to vector<16x1xf32>
    %cst_104 = arith.constant 0.0322580636 : f32
    %320 = vector.broadcast %cst_104 : f32 to vector<16x1xf32>
    %321 = arith.mulf %319, %320 : vector<16x1xf32>
    %322 = math.sqrt %321 : vector<16x1xf32>
    %cst_105 = arith.constant 9.99999997E-7 : f32
    %323 = vector.broadcast %cst_105 : f32 to vector<16x1xf32>
    %324 = arith.addf %322, %323 : vector<16x1xf32>
    %325 = tpu.reciprocal %324 {approx = true} : vector<16x1xf32> -> vector<16x1xf32>
    %326 = vector.broadcast %309 : vector<1x32xf32> to vector<16x32xf32>
    %327 = arith.mulf %326, %316 : vector<16x32xf32>
    %328 = vector.broadcast %325 : vector<16x1xf32> to vector<16x32xf32>
    %329 = arith.mulf %327, %328 : vector<16x32xf32>
    %330 = vector.broadcast %310 : vector<1x32xf32> to vector<16x32xf32>
    %331 = arith.addf %329, %330 : vector<16x32xf32>
    %c1_106 = arith.constant 1 : index
    %c0_107 = arith.constant 0 : index
    %c0_108 = arith.constant 0 : index
    %332 = vector.load %arg5[%c1_106, %c0_107, %c0_108] : memref<2x32x64xbf16, #tpu.memory_space<vmem>>, vector<1x32x64xbf16>
    %333 = vector.shape_cast %332 : vector<1x32x64xbf16> to vector<32x64xbf16>
    %334 = arith.truncf %331 : vector<16x32xf32> to vector<16x32xbf16>
    %cst_109 = arith.constant dense<0.000000e+00> : vector<16x64xf32>
    %335 = tpu.matmul %334, %333, %cst_109 {dimension_numbers = #tpu.dot_dimension_numbers<[1], [0], [0], [1], [0, 0, 1, 1], [], []>} : vector<16x32xbf16>, vector<32x64xbf16>, vector<16x64xf32> -> vector<16x64xf32>
    %c1_110 = arith.constant 1 : index
    %c0_111 = arith.constant 0 : index
    %c0_112 = arith.constant 0 : index
    %336 = vector.load %arg6[%c1_110, %c0_111, %c0_112] : memref<2x1x64xf32, #tpu.memory_space<vmem>>, vector<1x1x64xf32>
    %337 = vector.shape_cast %336 : vector<1x1x64xf32> to vector<1x64xf32>
    %338 = vector.broadcast %337 : vector<1x64xf32> to vector<16x64xf32>
    %339 = arith.addf %335, %338 : vector<16x64xf32>
    %cst_113 = arith.constant 0.000000e+00 : f32
    %340 = vector.broadcast %cst_113 : f32 to vector<16x64xf32>
    %341 = arith.maximumf %339, %340 : vector<16x64xf32>
    %c1_114 = arith.constant 1 : index
    %c0_115 = arith.constant 0 : index
    %c0_116 = arith.constant 0 : index
    %342 = vector.load %arg7[%c1_114, %c0_115, %c0_116] : memref<2x64x32xbf16, #tpu.memory_space<vmem>>, vector<1x64x32xbf16>
    %343 = vector.shape_cast %342 : vector<1x64x32xbf16> to vector<64x32xbf16>
    %344 = arith.truncf %341 : vector<16x64xf32> to vector<16x64xbf16>
    %cst_117 = arith.constant dense<0.000000e+00> : vector<16x32xf32>
    %345 = tpu.matmul %344, %343, %cst_117 {dimension_numbers = #tpu.dot_dimension_numbers<[1], [0], [0], [1], [0, 0, 1, 1], [], []>} : vector<16x64xbf16>, vector<64x32xbf16>, vector<16x32xf32> -> vector<16x32xf32>
    %346 = arith.addf %308, %345 : vector<16x32xf32>
    %c1_118 = arith.constant 1 : index
    %c0_119 = arith.constant 0 : index
    %c0_120 = arith.constant 0 : index
    %347 = vector.load %arg8[%c1_118, %c0_119, %c0_120] : memref<2x1x32xf32, #tpu.memory_space<vmem>>, vector<1x1x32xf32>
    %348 = vector.shape_cast %347 : vector<1x1x32xf32> to vector<1x32xf32>
    %349 = vector.broadcast %348 : vector<1x32xf32> to vector<16x32xf32>
    %350 = arith.addf %346, %349 : vector<16x32xf32>
    %351 = vector.extract_strided_slice %350 {offsets = [7, 0], sizes = [1, 32], strides = [1, 1]} : vector<16x32xf32> to vector<1x32xf32>
    %352 = vector.extract_strided_slice %350 {offsets = [15, 0], sizes = [1, 32], strides = [1, 1]} : vector<16x32xf32> to vector<1x32xf32>
    %353 = tpu.concatenate %351, %352 in 0 : vector<1x32xf32>, vector<1x32xf32> -> vector<2x32xf32>
    %354 = vector.extract_strided_slice %1 {offsets = [4, 0], sizes = [1, 32], strides = [1, 1]} : vector<5x32xf32> to vector<1x32xf32>
    %355 = vector.extract_strided_slice %2 {offsets = [4, 0], sizes = [1, 32], strides = [1, 1]} : vector<5x32xf32> to vector<1x32xf32>
    %cst_121 = arith.constant dense<0.000000e+00> : vector<2xf32>
    %356 = vector.multi_reduction <add>, %353, %cst_121 [1] : vector<2x32xf32> to vector<2xf32>
    %357 = vector.shape_cast %356 : vector<2xf32> to vector<2x1xf32>
    %cst_122 = arith.constant 3.200000e+01 : f32
    %358 = vector.broadcast %cst_122 : f32 to vector<2x1xf32>
    %359 = arith.divf %357, %358 : vector<2x1xf32>
    %360 = vector.broadcast %359 : vector<2x1xf32> to vector<2x32xf32>
    %361 = arith.subf %353, %360 : vector<2x32xf32>
    %362 = arith.mulf %361, %361 : vector<2x32xf32>
    %cst_123 = arith.constant dense<0.000000e+00> : vector<2xf32>
    %363 = vector.multi_reduction <add>, %362, %cst_123 [1] : vector<2x32xf32> to vector<2xf32>
    %364 = vector.shape_cast %363 : vector<2xf32> to vector<2x1xf32>
    %cst_124 = arith.constant 0.0322580636 : f32
    %365 = vector.broadcast %cst_124 : f32 to vector<2x1xf32>
    %366 = arith.mulf %364, %365 : vector<2x1xf32>
    %367 = math.sqrt %366 : vector<2x1xf32>
    %cst_125 = arith.constant 9.99999997E-7 : f32
    %368 = vector.broadcast %cst_125 : f32 to vector<2x1xf32>
    %369 = arith.addf %367, %368 : vector<2x1xf32>
    %370 = tpu.reciprocal %369 {approx = true} : vector<2x1xf32> -> vector<2x1xf32>
    %371 = vector.broadcast %354 : vector<1x32xf32> to vector<2x32xf32>
    %372 = arith.mulf %371, %361 : vector<2x32xf32>
    %373 = vector.broadcast %370 : vector<2x1xf32> to vector<2x32xf32>
    %374 = arith.mulf %372, %373 : vector<2x32xf32>
    %375 = vector.broadcast %355 : vector<1x32xf32> to vector<2x32xf32>
    %376 = arith.addf %374, %375 : vector<2x32xf32>
    %c0_126 = arith.constant 0 : index
    %c0_127 = arith.constant 0 : index
    %377 = vector.load %arg11[%c0_126, %c0_127] : memref<32x4xbf16, #tpu.memory_space<vmem>>, vector<32x4xbf16>
    %378 = arith.truncf %376 : vector<2x32xf32> to vector<2x32xbf16>
    %cst_128 = arith.constant dense<0.000000e+00> : vector<2x4xf32>
    %379 = tpu.matmul %378, %377, %cst_128 {dimension_numbers = #tpu.dot_dimension_numbers<[1], [0], [0], [1], [0, 0, 1, 1], [], []>} : vector<2x32xbf16>, vector<32x4xbf16>, vector<2x4xf32> -> vector<2x4xf32>
    %c0_129 = arith.constant 0 : index
    %c0_130 = arith.constant 0 : index
    %380 = vector.load %arg12[%c0_129, %c0_130] : memref<1x4xf32, #tpu.memory_space<vmem>>, vector<1x4xf32>
    %381 = vector.broadcast %380 : vector<1x4xf32> to vector<2x4xf32>
    %382 = arith.addf %379, %381 : vector<2x4xf32>
    %cst_131 = arith.constant dense<0xFF800000> : vector<2xf32>
    %383 = vector.multi_reduction <maximumf>, %382, %cst_131 [1] : vector<2x4xf32> to vector<2xf32>
    %384 = vector.shape_cast %383 : vector<2xf32> to vector<2x1xf32>
    %385 = vector.broadcast %384 : vector<2x1xf32> to vector<2x4xf32>
    %386 = arith.subf %382, %385 : vector<2x4xf32>
    %387 = math.exp %386 : vector<2x4xf32>
    %cst_132 = arith.constant dense<0.000000e+00> : vector<2xf32>
    %388 = vector.multi_reduction <add>, %387, %cst_132 [1] : vector<2x4xf32> to vector<2xf32>
    %389 = vector.shape_cast %388 : vector<2xf32> to vector<2x1xf32>
    %390 = tpu.reciprocal %389 {approx = true} : vector<2x1xf32> -> vector<2x1xf32>
    %391 = vector.broadcast %390 : vector<2x1xf32> to vector<2x4xf32>
    %392 = arith.mulf %387, %391 : vector<2x4xf32>
    %c0_133 = arith.constant 0 : index
    %c0_134 = arith.constant 0 : index
    %393 = vector.load %arg13[%c0_133, %c0_134] : memref<2x4xf32, #tpu.memory_space<vmem>>, vector<2x4xf32>
    tpu.vector_store %arg13[%c0_133, %c0_134], %392 {strides = array<i32>} : memref<2x4xf32, #tpu.memory_space<vmem>>, vector<2x4xf32>,
    return
  }
}

</mosaic_0001>

<llo_original>
// kernel: _lambda_.1
$region0: #{_lambda_.1}
  #allocation0 [shape = 'u32[]', space=smem, size = 0x4, offset = 0x4, fixed_abs, tag = 'smem constant byte address 0x4 - core index']
  #allocation1 [shape = 'u32[72,128]{1,0:T(1,128)}', space=vmem, size = 0x9000, scoped, tag = 'internal scratch']
  %s0 = inlined_call_operand.vmem [shape: f32[16,32], index: 0, kind: input, shape index: {}]
  %s1 = inlined_call_operand.vmem [shape: bf16[2,32,96], index: 1, kind: input, shape index: {}]
  %s2 = inlined_call_operand.vmem [shape: f32[2,1,96], index: 2, kind: input, shape index: {}]
  %s3 = inlined_call_operand.vmem [shape: bf16[2,32,32], index: 3, kind: input, shape index: {}]
  %s4 = inlined_call_operand.vmem [shape: f32[2,1,32], index: 4, kind: input, shape index: {}]
  %s5 = inlined_call_operand.vmem [shape: bf16[2,32,64], index: 5, kind: input, shape index: {}]
  %s6 = inlined_call_operand.vmem [shape: f32[2,1,64], index: 6, kind: input, shape index: {}]
  %s7 = inlined_call_operand.vmem [shape: bf16[2,64,32], index: 7, kind: input, shape index: {}]
  %s8 = inlined_call_operand.vmem [shape: f32[2,1,32], index: 8, kind: input, shape index: {}]
  %s9 = inlined_call_operand.vmem [shape: f32[5,32], index: 9, kind: input, shape index: {}]
  %s10 = inlined_call_operand.vmem [shape: f32[5,32], index: 10, kind: input, shape index: {}]
  %s11 = inlined_call_operand.vmem [shape: bf16[32,4], index: 11, kind: input, shape index: {}]
  %s12 = inlined_call_operand.vmem [shape: f32[1,4], index: 12, kind: input, shape index: {}]
  %s13 = inlined_call_operand.hbm [shape: f32[2,4], index: 13, kind: output, shape index: {}]
  %s14 = sld [smem:[#allocation0]]
  $region62: #{_lambda_.1} parent=0
    _
  %s16 = ssub.s32 1, %s14
  %s17 = scalar_select 0, %s16, %s14
  $region1: #{_lambda_.1} parent=0
    #allocation2 [shape = 'u8[1024]{0}', space=vmem, size = 0x400, scoped, tag = 'output window, operand 0, single buffered']
    #allocation3 [shape = 's32[1]{0}', space=sflag, size = 0x4, scoped, tag = 'scoped memory for _lambda_.1']
    %18 = vsyncpa [#allocation3], 0
    // Predicated region
    $region2: #{_lambda_.1} parent=1 // pred_check
      _
    $region3: #{_lambda_.1} parent=1 // pred_check_branch
      %20 = sbr.rel (0) target = $region5
    $region4: #{_lambda_.1} parent=1 // pred_region
      _
    $region5: #{_lambda_.1} parent=1 // pred_fallthru
      _
    // Predicated region
    $region6: #{_lambda_.1} parent=1 // pred_check
      _
    $region7: #{_lambda_.1} parent=1 // pred_check_branch
      %22 = sbr.rel (0) target = $region9
    $region8: #{_lambda_.1} parent=1 // pred_region
      _
    $region9: #{_lambda_.1} parent=1 // pred_fallthru
      _
    // Predicated region
    $region10: #{_lambda_.1} parent=1 // pred_check
      _
    $region11: #{_lambda_.1} parent=1 // pred_check_branch
      %24 = sbr.rel (0) target = $region13
    $region12: #{_lambda_.1} parent=1 // pred_region
      _
    $region13: #{_lambda_.1} parent=1 // pred_fallthru
      _
    // Predicated region
    $region14: #{_lambda_.1} parent=1 // pred_check
      _
    $region15: #{_lambda_.1} parent=1 // pred_check_branch
      %26 = sbr.rel (0) target = $region17
    $region16: #{_lambda_.1} parent=1 // pred_region
      _
    $region17: #{_lambda_.1} parent=1 // pred_fallthru
      _
    // Predicated region
    $region18: #{_lambda_.1} parent=1 // pred_check
      _
    $region19: #{_lambda_.1} parent=1 // pred_check_branch
      %28 = sbr.rel (0) target = $region21
    $region20: #{_lambda_.1} parent=1 // pred_region
      _
    $region21: #{_lambda_.1} parent=1 // pred_fallthru
      _
    // Predicated region
    $region22: #{_lambda_.1} parent=1 // pred_check
      _
    $region23: #{_lambda_.1} parent=1 // pred_check_branch
      %30 = sbr.rel (0) target = $region25
    $region24: #{_lambda_.1} parent=1 // pred_region
      _
    $region25: #{_lambda_.1} parent=1 // pred_fallthru
      _
    // Predicated region
    $region26: #{_lambda_.1} parent=1 // pred_check
      _
    $region27: #{_lambda_.1} parent=1 // pred_check_branch
      %32 = sbr.rel (0) target = $region29
    $region28: #{_lambda_.1} parent=1 // pred_region
      _
    $region29: #{_lambda_.1} parent=1 // pred_fallthru
      _
    // Predicated region
    $region30: #{_lambda_.1} parent=1 // pred_check
      _
    $region31: #{_lambda_.1} parent=1 // pred_check_branch
      %34 = sbr.rel (0) target = $region33
    $region32: #{_lambda_.1} parent=1 // pred_region
      _
    $region33: #{_lambda_.1} parent=1 // pred_fallthru
      _
    // Predicated region
    $region34: #{_lambda_.1} parent=1 // pred_check
      _
    $region35: #{_lambda_.1} parent=1 // pred_check_branch
      %36 = sbr.rel (0) target = $region37
    $region36: #{_lambda_.1} parent=1 // pred_region
      _
    $region37: #{_lambda_.1} parent=1 // pred_fallthru
      _
    // Predicated region
    $region38: #{_lambda_.1} parent=1 // pred_check
      _
    $region39: #{_lambda_.1} parent=1 // pred_check_branch
      %38 = sbr.rel (0) target = $region41
    $region40: #{_lambda_.1} parent=1 // pred_region
      _
    $region41: #{_lambda_.1} parent=1 // pred_fallthru
      _
    // Predicated region
    $region42: #{_lambda_.1} parent=1 // pred_check
      _
    $region43: #{_lambda_.1} parent=1 // pred_check_branch
      %40 = sbr.rel (0) target = $region45
    $region44: #{_lambda_.1} parent=1 // pred_region
      _
    $region45: #{_lambda_.1} parent=1 // pred_fallthru
      _
    // Predicated region
    $region46: #{_lambda_.1} parent=1 // pred_check
      _
    $region47: #{_lambda_.1} parent=1 // pred_check_branch
      %42 = sbr.rel (0) target = $region49
    $region48: #{_lambda_.1} parent=1 // pred_region
      _
    $region49: #{_lambda_.1} parent=1 // pred_fallthru
      _
    // Predicated region
    $region50: #{_lambda_.1} parent=1 // pred_check
      _
    $region51: #{_lambda_.1} parent=1 // pred_check_branch
      %44 = sbr.rel (0) target = $region53
    $region52: #{_lambda_.1} parent=1 // pred_region
      _
    $region53: #{_lambda_.1} parent=1 // pred_fallthru
      _
    %v46 = vld [vmem:[%s0] sm:$0xff]
    %v47 = vld [vmem:[%s0 + $0x8] sm:$0xff]
    %v48 = vld [vmem:[%s9] sm:$0x1f]
    %v49 = vld [vmem:[%s10] sm:$0x1f]
    %vm50 = vcmask 261120
    %v51 = vsel %vm50, %v46, 0.0
    %52 = vadd.xlane.f32.xlu0 %v51
    %v53 = vpop.xlane.xlu0 %52
    %v54 = vsel %vm50, %v47, 0.0
    %55 = vadd.xlane.f32.xlu0 %v54
    %v56 = vpop.xlane.xlu0 %55
    %v57 = vrcp.pop 32.0
    %v58 = vmul.f32 32.0, %v57
    %v59 = vsub.f32 1.0, %v58
    %v60 = vmul.f32 %v57, %v59
    %v61 = vadd.f32 %v57, %v60
    %vm62 = vweird.f32 %v57
    %v63 = vsel %vm62, %v57, %v61
    %v64 = vmul.f32 %v53, %v63
    %v65 = vmul.f32 %v56, %v63
    %v66 = vsub.f32 %v46, %v64
    %v67 = vsub.f32 %v47, %v65
    %v68 = vmul.f32 %v66, %v66
    %v69 = vmul.f32 %v67, %v67
    %v70 = vsel %vm50, %v68, 0.0
    %71 = vadd.xlane.f32.xlu0 %v70
    %v72 = vpop.xlane.xlu0 %71
    %v73 = vsel %vm50, %v69, 0.0
    %74 = vadd.xlane.f32.xlu0 %v73
    %v75 = vpop.xlane.xlu0 %74
    %v76 = vmul.f32 %v72, 0.032258064
    %v77 = vmul.f32 %v75, 0.032258064
    %v78 = vrsqrt.pop %v76
    %v79 = vmul.f32 %v78, %v76
    %v80 = vmul.f32 %v79, %v78
    %v81 = vmul.f32 0.5, %v80
    %v82 = vsub.f32 1.5, %v81
    %v83 = vmul.f32 %v78, %v82
    %v84 = vmul.f32 %v76, %v83
    %vm85 = vcmp.eq.f32.partialorder %v76, inf
    %v86 = vsel %vm85, %v76, %v84
    %vm87 = vcmp.eq.f32.partialorder %v76, 0.0
    %v88 = vand.u32 %v76, 2147483648
    %v89 = vsel %vm87, %v88, %v86
    %v90 = vrsqrt.pop %v77
    %v91 = vmul.f32 %v90, %v77
    %v92 = vmul.f32 %v91, %v90
    %v93 = vmul.f32 0.5, %v92
    %v94 = vsub.f32 1.5, %v93
    %v95 = vmul.f32 %v90, %v94
    %v96 = vmul.f32 %v77, %v95
    %vm97 = vcmp.eq.f32.partialorder %v77, inf
    %v98 = vsel %vm97, %v77, %v96
    %vm99 = vcmp.eq.f32.partialorder %v77, 0.0
    %v100 = vand.u32 %v77, 2147483648
    %v101 = vsel %vm99, %v100, %v98
    %v102 = vadd.f32 %v89, 1e-06
    %v103 = vadd.f32 %v101, 1e-06
    %v104 = vrcp.pop %v102
    %v105 = vrcp.pop %v103
    %v106 = vperm.slane %v48, 0
    %v107 = vmul.f32 %v106, %v66
    %v108 = vmul.f32 %v106, %v67
    %v109 = vmul.f32 %v107, %v104
    %v110 = vmul.f32 %v108, %v105
    %v111 = vperm.slane %v49, 0
    %v112 = vadd.f32 %v109, %v111
    %v113 = vadd.f32 %v110, %v111
    %v114 = vld [vmem:[%s1] sm:$0xf]
    %v115 = vld [vmem:[%s1 + $0x4] sm:$0xf]
    %v116 = vld [vmem:[%s1 + $0x8] sm:$0xf]
    %v117 = vld [vmem:[%s1 + $0xc] sm:$0xf]
    %v118 = vpack.c.bf16 %v113, %v112
    %v119 = vld [vmem:[%s2] sm:$0x1]
    %v121 = vperm.slane %v119, 0
    %v127 = vunpack.c.l.b16 %v114
    %v128 = vunpack.c.l.b16 %v115
    %v129 = vunpack.c.l.b16 %v116
    %v130 = vunpack.c.l.b16 %v117
    %v131 = vpack.c.b16 %v128, %v127
    %v132 = vpack.c.b16 %v130, %v129
    %v136 = vsel %vm50, %v118, 0
    %138 = vmatpush.bf16.msra.mxu0 0
    %139 = vmatpush.bf16.msra.mxu0 0
    %140 = vmatpush.bf16.msra.mxu0 0
    %141 = vmatpush.bf16.msra.mxu0 0
    %142 = vmatpush.bf16.msra.mxu0 0
    %143 = vmatpush.bf16.msra.mxu0 0
    %144 = vmatpush.bf16.msra.mxu0 %v132
    %145 = vmatpush.bf16.msra.mxu0 %v131
    %146 = vmatmul.bf16.gmra.mxu0 %v136
    %v147 = vpop.f32.mrf.mxu0
    %v148 = vadd.f32 %v121, %v147
    %v149 = vpop.f32.mrf.mxu0
    %v150 = vadd.f32 %v121, %v149
    %151 = vdwg.mxu0
    %v152 = vpack.c.bf16 %v148, %v148
    %v153 = vpack.c.bf16 %v150, %v150
    %v155 = vunpack.c.l.b16 %v152
    %v156 = vpack.c.b16 %v155, %v155
    %157 = vrot.lane.b32.xlu0 %v156, 96
    %v158 = vpop.permute.xlu0 %157
    %vm159 = vcmask 64512
    %v161 = vsel %vm159, %v152, 0
    %v164 = vsel %vm159, %v158, 0
    %166 = vmatpush.bf16.xpose.msra.mxu0 0
    %167 = vmatpush.bf16.xpose.msra.mxu0 0
    %168 = vmatpush.bf16.xpose.msra.mxu0 0
    %169 = vmatpush.bf16.xpose.msra.mxu0 0
    %170 = vmatpush.bf16.xpose.msra.mxu0 0
    %171 = vmatpush.bf16.xpose.msra.mxu0 0
    %172 = vmatpush.bf16.xpose.msra.mxu0 0
    %173 = vmatpush.bf16.xpose.msra.mxu0 %v164
    %174 = vmatmul.bf16.gmra.mxu0 %v161
    %v175 = vpop.f32.mrf.mxu0
    %v176 = vadd.f32 0.0, %v175
    %v177 = vpop.f32.mrf.mxu0
    %178 = vdwg.mxu0
    %v180 = vunpack.c.l.b16 %v153
    %v181 = vpack.c.b16 %v180, %v180
    %182 = vrot.lane.b32.xlu0 %v181, 96
    %v183 = vpop.permute.xlu0 %182
    %v185 = vsel %vm159, %v153, 0
    %v188 = vsel %vm159, %v183, 0
    %190 = vmatpush.bf16.xpose.msra.mxu0 0
    %191 = vmatpush.bf16.xpose.msra.mxu0 0
    %192 = vmatpush.bf16.xpose.msra.mxu0 0
    %193 = vmatpush.bf16.xpose.msra.mxu0 0
    %194 = vmatpush.bf16.xpose.msra.mxu0 0
    %195 = vmatpush.bf16.xpose.msra.mxu0 0
    %196 = vmatpush.bf16.xpose.msra.mxu0 0
    %197 = vmatpush.bf16.xpose.msra.mxu0 %v188
    %198 = vmatmul.bf16.gmra.mxu0 %v185
    %v199 = vpop.f32.mrf.mxu0
    %v200 = vadd.f32 0.0, %v199
    %v201 = vpop.f32.mrf.mxu0
    %202 = vdwg.mxu0
    %v203 = vmul.f32 %v176, 0.35355338
    %v204 = vmul.f32 %v200, 0.35355338
    %v205 = vsel %vm159, %v203, -inf
    %206 = vmax.xlane.f32.xlu0 %v205
    %v207 = vpop.xlane.xlu0 %206
    %v208 = vsel %vm159, %v204, -inf
    %209 = vmax.xlane.f32.xlu0 %v208
    %v210 = vpop.xlane.xlu0 %209
    %v211 = vsub.f32 %v203, %v207
    %v212 = vsub.f32 %v204, %v210
    %v213 = vmul.f32 %v211, 1.442695
    %v214 = vpow.pop %v213
    %v215 = vmul.f32 %v212, 1.442695
    %v216 = vpow.pop %v215
    %v217 = vsel %vm159, %v214, 0.0
    %218 = vadd.xlane.f32.xlu0 %v217
    %v219 = vpop.xlane.xlu0 %218
    %v220 = vsel %vm159, %v216, 0.0
    %221 = vadd.xlane.f32.xlu0 %v220
    %v222 = vpop.xlane.xlu0 %221
    %v223 = vrcp.pop %v219
    %v224 = vrcp.pop %v222
    %v225 = vmul.f32 %v214, %v223
    %v226 = vmul.f32 %v216, %v224
    %v227 = vpack.c.bf16 %v225, %v225
    %v228 = vpack.c.bf16 %v226, %v226
    %229 = vrot.lane.b32.xlu0 %v156, 64
    %v230 = vpop.permute.xlu0 %229
    %v232 = vsel %vm159, %v227, 0
    %vm234 = vcmask 1043456
    %v236 = vsel %vm234, %v230, 0
    %238 = vmatpush.bf16.msra.mxu0 0
    %239 = vmatpush.bf16.msra.mxu0 0
    %240 = vmatpush.bf16.msra.mxu0 0
    %241 = vmatpush.bf16.msra.mxu0 0
    %242 = vmatpush.bf16.msra.mxu0 0
    %243 = vmatpush.bf16.msra.mxu0 0
    %244 = vmatpush.bf16.msra.mxu0 0
    %245 = vmatpush.bf16.msra.mxu0 %v236
    %246 = vmatmul.bf16.gmra.mxu0 %v232
    %v247 = vpop.f32.mrf.mxu0
    %v248 = vadd.f32 0.0, %v247
    %v249 = vpop.f32.mrf.mxu0
    %250 = vdwg.mxu0
    %251 = vrot.lane.b32.xlu0 %v181, 64
    %v252 = vpop.permute.xlu0 %251
    %v254 = vsel %vm159, %v228, 0
    %v257 = vsel %vm234, %v252, 0
    %259 = vmatpush.bf16.msra.mxu0 0
    %260 = vmatpush.bf16.msra.mxu0 0
    %261 = vmatpush.bf16.msra.mxu0 0
    %262 = vmatpush.bf16.msra.mxu0 0
    %263 = vmatpush.bf16.msra.mxu0 0
    %264 = vmatpush.bf16.msra.mxu0 0
    %265 = vmatpush.bf16.msra.mxu0 0
    %266 = vmatpush.bf16.msra.mxu0 %v257
    %267 = vmatmul.bf16.gmra.mxu0 %v254
    %v268 = vpop.f32.mrf.mxu0
    %v269 = vadd.f32 0.0, %v268
    %v270 = vpop.f32.mrf.mxu0
    %271 = vdwg.mxu0
    %272 = vrot.lane.b32.xlu0 %v156, 120
    %v273 = vpop.permute.xlu0 %272
    %274 = vrot.lane.b32.xlu0 %v156, 88
    %v275 = vpop.permute.xlu0 %274
    %v277 = vsel %vm159, %v273, 0
    %v280 = vsel %vm159, %v275, 0
    %282 = vmatpush.bf16.xpose.msra.mxu0 0
    %283 = vmatpush.bf16.xpose.msra.mxu0 0
    %284 = vmatpush.bf16.xpose.msra.mxu0 0
    %285 = vmatpush.bf16.xpose.msra.mxu0 0
    %286 = vmatpush.bf16.xpose.msra.mxu0 0
    %287 = vmatpush.bf16.xpose.msra.mxu0 0
    %288 = vmatpush.bf16.xpose.msra.mxu0 0
    %289 = vmatpush.bf16.xpose.msra.mxu0 %v280
    %290 = vmatmul.bf16.gmra.mxu0 %v277
    %v291 = vpop.f32.mrf.mxu0
    %v292 = vadd.f32 0.0, %v291
    %v293 = vpop.f32.mrf.mxu0
    %294 = vdwg.mxu0
    %295 = vrot.lane.b32.xlu0 %v181, 120
    %v296 = vpop.permute.xlu0 %295
    %297 = vrot.lane.b32.xlu0 %v181, 88
    %v298 = vpop.permute.xlu0 %297
    %v300 = vsel %vm159, %v296, 0
    %v303 = vsel %vm159, %v298, 0
    %305 = vmatpush.bf16.xpose.msra.mxu0 0
    %306 = vmatpush.bf16.xpose.msra.mxu0 0
    %307 = vmatpush.bf16.xpose.msra.mxu0 0
    %308 = vmatpush.bf16.xpose.msra.mxu0 0
    %309 = vmatpush.bf16.xpose.msra.mxu0 0
    %310 = vmatpush.bf16.xpose.msra.mxu0 0
    %311 = vmatpush.bf16.xpose.msra.mxu0 0
    %312 = vmatpush.bf16.xpose.msra.mxu0 %v303
    %313 = vmatmul.bf16.gmra.mxu0 %v300
    %v314 = vpop.f32.mrf.mxu0
    %v315 = vadd.f32 0.0, %v314
    %v316 = vpop.f32.mrf.mxu0
    %317 = vdwg.mxu0
    %v318 = vmul.f32 %v292, 0.35355338
    %v319 = vmul.f32 %v315, 0.35355338
    %v320 = vsel %vm159, %v318, -inf
    %321 = vmax.xlane.f32.xlu0 %v320
    %v322 = vpop.xlane.xlu0 %321
    %v323 = vsel %vm159, %v319, -inf
    %324 = vmax.xlane.f32.xlu0 %v323
    %v325 = vpop.xlane.xlu0 %324
    %v326 = vsub.f32 %v318, %v322
    %v327 = vsub.f32 %v319, %v325
    %v328 = vmul.f32 %v326, 1.442695
    %v329 = vpow.pop %v328
    %v330 = vmul.f32 %v327, 1.442695
    %v331 = vpow.pop %v330
    %v332 = vsel %vm159, %v329, 0.0
    %333 = vadd.xlane.f32.xlu0 %v332
    %v334 = vpop.xlane.xlu0 %333
    %v335 = vsel %vm159, %v331, 0.0
    %336 = vadd.xlane.f32.xlu0 %v335
    %v337 = vpop.xlane.xlu0 %336
    %v338 = vrcp.pop %v334
    %v339 = vrcp.pop %v337
    %v340 = vmul.f32 %v329, %v338
    %v341 = vmul.f32 %v331, %v339
    %v342 = vpack.c.bf16 %v340, %v340
    %v343 = vpack.c.bf16 %v341, %v341
    %344 = vrot.lane.b32.xlu0 %v156, 56
    %v345 = vpop.permute.xlu0 %344
    %v347 = vsel %vm159, %v342, 0
    %v350 = vsel %vm234, %v345, 0
    %352 = vmatpush.bf16.msra.mxu0 0
    %353 = vmatpush.bf16.msra.mxu0 0
    %354 = vmatpush.bf16.msra.mxu0 0
    %355 = vmatpush.bf16.msra.mxu0 0
    %356 = vmatpush.bf16.msra.mxu0 0
    %357 = vmatpush.bf16.msra.mxu0 0
    %358 = vmatpush.bf16.msra.mxu0 0
    %359 = vmatpush.bf16.msra.mxu0 %v350
    %360 = vmatmul.bf16.gmra.mxu0 %v347
    %v361 = vpop.f32.mrf.mxu0
    %v362 = vadd.f32 0.0, %v361
    %v363 = vpop.f32.mrf.mxu0
    %364 = vdwg.mxu0
    %365 = vrot.lane.b32.xlu0 %v181, 56
    %v366 = vpop.permute.xlu0 %365
    %v368 = vsel %vm159, %v343, 0
    %v371 = vsel %vm234, %v366, 0
    %373 = vmatpush.bf16.msra.mxu0 0
    %374 = vmatpush.bf16.msra.mxu0 0
    %375 = vmatpush.bf16.msra.mxu0 0
    %376 = vmatpush.bf16.msra.mxu0 0
    %377 = vmatpush.bf16.msra.mxu0 0
    %378 = vmatpush.bf16.msra.mxu0 0
    %379 = vmatpush.bf16.msra.mxu0 0
    %380 = vmatpush.bf16.msra.mxu0 %v371
    %381 = vmatmul.bf16.gmra.mxu0 %v368
    %v382 = vpop.f32.mrf.mxu0
    %v383 = vadd.f32 0.0, %v382
    %v384 = vpop.f32.mrf.mxu0
    %385 = vdwg.mxu0
    %386 = vrot.lane.b32.xlu0 %v156, 112
    %v387 = vpop.permute.xlu0 %386
    %388 = vrot.lane.b32.xlu0 %v156, 80
    %v389 = vpop.permute.xlu0 %388
    %v391 = vsel %vm159, %v387, 0
    %v394 = vsel %vm159, %v389, 0
    %396 = vmatpush.bf16.xpose.msra.mxu0 0
    %397 = vmatpush.bf16.xpose.msra.mxu0 0
    %398 = vmatpush.bf16.xpose.msra.mxu0 0
    %399 = vmatpush.bf16.xpose.msra.mxu0 0
    %400 = vmatpush.bf16.xpose.msra.mxu0 0
    %401 = vmatpush.bf16.xpose.msra.mxu0 0
    %402 = vmatpush.bf16.xpose.msra.mxu0 0
    %403 = vmatpush.bf16.xpose.msra.mxu0 %v394
    %404 = vmatmul.bf16.gmra.mxu0 %v391
    %v405 = vpop.f32.mrf.mxu0
    %v406 = vadd.f32 0.0, %v405
    %v407 = vpop.f32.mrf.mxu0
    %408 = vdwg.mxu0
    %409 = vrot.lane.b32.xlu0 %v181, 112
    %v410 = vpop.permute.xlu0 %409
    %411 = vrot.lane.b32.xlu0 %v181, 80
    %v412 = vpop.permute.xlu0 %411
    %v414 = vsel %vm159, %v410, 0
    %v417 = vsel %vm159, %v412, 0
    %419 = vmatpush.bf16.xpose.msra.mxu0 0
    %420 = vmatpush.bf16.xpose.msra.mxu0 0
    %421 = vmatpush.bf16.xpose.msra.mxu0 0
    %422 = vmatpush.bf16.xpose.msra.mxu0 0
    %423 = vmatpush.bf16.xpose.msra.mxu0 0
    %424 = vmatpush.bf16.xpose.msra.mxu0 0
    %425 = vmatpush.bf16.xpose.msra.mxu0 0
    %426 = vmatpush.bf16.xpose.msra.mxu0 %v417
    %427 = vmatmul.bf16.gmra.mxu0 %v414
    %v428 = vpop.f32.mrf.mxu0
    %v429 = vadd.f32 0.0, %v428
    %v430 = vpop.f32.mrf.mxu0
    %431 = vdwg.mxu0
    %v432 = vmul.f32 %v406, 0.35355338
    %v433 = vmul.f32 %v429, 0.35355338
    %v434 = vsel %vm159, %v432, -inf
    %435 = vmax.xlane.f32.xlu0 %v434
    %v436 = vpop.xlane.xlu0 %435
    %v437 = vsel %vm159, %v433, -inf
    %438 = vmax.xlane.f32.xlu0 %v437
    %v439 = vpop.xlane.xlu0 %438
    %v440 = vsub.f32 %v432, %v436
    %v441 = vsub.f32 %v433, %v439
    %v442 = vmul.f32 %v440, 1.442695
    %v443 = vpow.pop %v442
    %v444 = vmul.f32 %v441, 1.442695
    %v445 = vpow.pop %v444
    %v446 = vsel %vm159, %v443, 0.0
    %447 = vadd.xlane.f32.xlu0 %v446
    %v448 = vpop.xlane.xlu0 %447
    %v449 = vsel %vm159, %v445, 0.0
    %450 = vadd.xlane.f32.xlu0 %v449
    %v451 = vpop.xlane.xlu0 %450
    %v452 = vrcp.pop %v448
    %v453 = vrcp.pop %v451
    %v454 = vmul.f32 %v443, %v452
    %v455 = vmul.f32 %v445, %v453
    %v456 = vpack.c.bf16 %v454, %v454
    %v457 = vpack.c.bf16 %v455, %v455
    %458 = vrot.lane.b32.xlu0 %v156, 48
    %v459 = vpop.permute.xlu0 %458
    %v461 = vsel %vm159, %v456, 0
    %v464 = vsel %vm234, %v459, 0
    %466 = vmatpush.bf16.msra.mxu0 0
    %467 = vmatpush.bf16.msra.mxu0 0
    %468 = vmatpush.bf16.msra.mxu0 0
    %469 = vmatpush.bf16.msra.mxu0 0
    %470 = vmatpush.bf16.msra.mxu0 0
    %471 = vmatpush.bf16.msra.mxu0 0
    %472 = vmatpush.bf16.msra.mxu0 0
    %473 = vmatpush.bf16.msra.mxu0 %v464
    %474 = vmatmul.bf16.gmra.mxu0 %v461
    %v475 = vpop.f32.mrf.mxu0
    %v476 = vadd.f32 0.0, %v475
    %v477 = vpop.f32.mrf.mxu0
    %478 = vdwg.mxu0
    %479 = vrot.lane.b32.xlu0 %v181, 48
    %v480 = vpop.permute.xlu0 %479
    %v482 = vsel %vm159, %v457, 0
    %v485 = vsel %vm234, %v480, 0
    %487 = vmatpush.bf16.msra.mxu0 0
    %488 = vmatpush.bf16.msra.mxu0 0
    %489 = vmatpush.bf16.msra.mxu0 0
    %490 = vmatpush.bf16.msra.mxu0 0
    %491 = vmatpush.bf16.msra.mxu0 0
    %492 = vmatpush.bf16.msra.mxu0 0
    %493 = vmatpush.bf16.msra.mxu0 0
    %494 = vmatpush.bf16.msra.mxu0 %v485
    %495 = vmatmul.bf16.gmra.mxu0 %v482
    %v496 = vpop.f32.mrf.mxu0
    %v497 = vadd.f32 0.0, %v496
    %v498 = vpop.f32.mrf.mxu0
    %499 = vdwg.mxu0
    %500 = vrot.lane.b32.xlu0 %v156, 104
    %v501 = vpop.permute.xlu0 %500
    %502 = vrot.lane.b32.xlu0 %v156, 72
    %v503 = vpop.permute.xlu0 %502
    %v505 = vsel %vm159, %v501, 0
    %v508 = vsel %vm159, %v503, 0
    %510 = vmatpush.bf16.xpose.msra.mxu0 0
    %511 = vmatpush.bf16.xpose.msra.mxu0 0
    %512 = vmatpush.bf16.xpose.msra.mxu0 0
    %513 = vmatpush.bf16.xpose.msra.mxu0 0
    %514 = vmatpush.bf16.xpose.msra.mxu0 0
    %515 = vmatpush.bf16.xpose.msra.mxu0 0
    %516 = vmatpush.bf16.xpose.msra.mxu0 0
    %517 = vmatpush.bf16.xpose.msra.mxu0 %v508
    %518 = vmatmul.bf16.gmra.mxu0 %v505
    %v519 = vpop.f32.mrf.mxu0
    %v520 = vadd.f32 0.0, %v519
    %v521 = vpop.f32.mrf.mxu0
    %522 = vdwg.mxu0
    %523 = vrot.lane.b32.xlu0 %v181, 104
    %v524 = vpop.permute.xlu0 %523
    %525 = vrot.lane.b32.xlu0 %v181, 72
    %v526 = vpop.permute.xlu0 %525
    %v528 = vsel %vm159, %v524, 0
    %v531 = vsel %vm159, %v526, 0
    %533 = vmatpush.bf16.xpose.msra.mxu0 0
    %534 = vmatpush.bf16.xpose.msra.mxu0 0
    %535 = vmatpush.bf16.xpose.msra.mxu0 0
    %536 = vmatpush.bf16.xpose.msra.mxu0 0
    %537 = vmatpush.bf16.xpose.msra.mxu0 0
    %538 = vmatpush.bf16.xpose.msra.mxu0 0
    %539 = vmatpush.bf16.xpose.msra.mxu0 0
    %540 = vmatpush.bf16.xpose.msra.mxu0 %v531
    %541 = vmatmul.bf16.gmra.mxu0 %v528
    %v542 = vpop.f32.mrf.mxu0
    %v543 = vadd.f32 0.0, %v542
    %v544 = vpop.f32.mrf.mxu0
    %545 = vdwg.mxu0
    %v546 = vmul.f32 %v520, 0.35355338
    %v547 = vmul.f32 %v543, 0.35355338
    %v548 = vsel %vm159, %v546, -inf
    %549 = vmax.xlane.f32.xlu0 %v548
    %v550 = vpop.xlane.xlu0 %549
    %v551 = vsel %vm159, %v547, -inf
    %552 = vmax.xlane.f32.xlu0 %v551
    %v553 = vpop.xlane.xlu0 %552
    %v554 = vsub.f32 %v546, %v550
    %v555 = vsub.f32 %v547, %v553
    %v556 = vmul.f32 %v554, 1.442695
    %v557 = vpow.pop %v556
    %v558 = vmul.f32 %v555, 1.442695
    %v559 = vpow.pop %v558
    %v560 = vsel %vm159, %v557, 0.0
    %561 = vadd.xlane.f32.xlu0 %v560
    %v562 = vpop.xlane.xlu0 %561
    %v563 = vsel %vm159, %v559, 0.0
    %564 = vadd.xlane.f32.xlu0 %v563
    %v565 = vpop.xlane.xlu0 %564
    %v566 = vrcp.pop %v562
    %v567 = vrcp.pop %v565
    %v568 = vmul.f32 %v557, %v566
    %v569 = vmul.f32 %v559, %v567
    %v570 = vpack.c.bf16 %v568, %v568
    %v571 = vpack.c.bf16 %v569, %v569
    %572 = vrot.lane.b32.xlu0 %v156, 40
    %v573 = vpop.permute.xlu0 %572
    %v575 = vsel %vm159, %v570, 0
    %v578 = vsel %vm234, %v573, 0
    %580 = vmatpush.bf16.msra.mxu0 0
    %581 = vmatpush.bf16.msra.mxu0 0
    %582 = vmatpush.bf16.msra.mxu0 0
    %583 = vmatpush.bf16.msra.mxu0 0
    %584 = vmatpush.bf16.msra.mxu0 0
    %585 = vmatpush.bf16.msra.mxu0 0
    %586 = vmatpush.bf16.msra.mxu0 0
    %587 = vmatpush.bf16.msra.mxu0 %v578
    %588 = vmatmul.bf16.gmra.mxu0 %v575
    %v589 = vpop.f32.mrf.mxu0
    %v590 = vadd.f32 0.0, %v589
    %v591 = vpop.f32.mrf.mxu0
    %592 = vdwg.mxu0
    %593 = vrot.lane.b32.xlu0 %v181, 40
    %v594 = vpop.permute.xlu0 %593
    %v596 = vsel %vm159, %v571, 0
    %v599 = vsel %vm234, %v594, 0
    %601 = vmatpush.bf16.msra.mxu0 0
    %602 = vmatpush.bf16.msra.mxu0 0
    %603 = vmatpush.bf16.msra.mxu0 0
    %604 = vmatpush.bf16.msra.mxu0 0
    %605 = vmatpush.bf16.msra.mxu0 0
    %606 = vmatpush.bf16.msra.mxu0 0
    %607 = vmatpush.bf16.msra.mxu0 0
    %608 = vmatpush.bf16.msra.mxu0 %v599
    %609 = vmatmul.bf16.gmra.mxu0 %v596
    %v610 = vpop.f32.mrf.mxu0
    %v611 = vadd.f32 0.0, %v610
    %v612 = vpop.f32.mrf.mxu0
    %613 = vdwg.mxu0
    %616 = vrot.lane.b32.xlu0 %v362, 8
    %v617 = vpop.permute.xlu0 %616
    %618 = vrot.lane.b32.xlu0 %v383, 8
    %v619 = vpop.permute.xlu0 %618
    %624 = vrot.lane.b32.xlu0 %v476, 16
    %v625 = vpop.permute.xlu0 %624
    %626 = vrot.lane.b32.xlu0 %v497, 16
    %v627 = vpop.permute.xlu0 %626
    %632 = vrot.lane.b32.xlu0 %v590, 24
    %v633 = vpop.permute.xlu0 %632
    %634 = vrot.lane.b32.xlu0 %v611, 24
    %v635 = vpop.permute.xlu0 %634
    %v638 = vsel %vm159, %v248, %v617
    %v639 = vsel %vm159, %v269, %v619
    %vm640 = vcmask 130048
    %v641 = vsel %vm640, %v638, %v625
    %v642 = vsel %vm640, %v639, %v627
    %vm643 = vcmask 195584
    %v644 = vsel %vm643, %v641, %v633
    %v645 = vsel %vm643, %v642, %v635
    %v646 = vld [vmem:[%s3] sm:$0xf]
    %v647 = vld [vmem:[%s3 + $0x4] sm:$0xf]
    %v648 = vld [vmem:[%s3 + $0x8] sm:$0xf]
    %v649 = vld [vmem:[%s3 + $0xc] sm:$0xf]
    %v650 = vpack.c.bf16 %v645, %v644
    %v655 = vunpack.c.l.b16 %v646
    %v656 = vunpack.c.l.b16 %v647
    %v657 = vunpack.c.l.b16 %v648
    %v658 = vunpack.c.l.b16 %v649
    %v659 = vpack.c.b16 %v656, %v655
    %v660 = vpack.c.b16 %v658, %v657
    %v664 = vsel %vm50, %v650, 0
    %666 = vmatpush.bf16.msra.mxu0 0
    %667 = vmatpush.bf16.msra.mxu0 0
    %668 = vmatpush.bf16.msra.mxu0 0
    %669 = vmatpush.bf16.msra.mxu0 0
    %670 = vmatpush.bf16.msra.mxu0 0
    %671 = vmatpush.bf16.msra.mxu0 0
    %672 = vmatpush.bf16.msra.mxu0 %v660
    %673 = vmatpush.bf16.msra.mxu0 %v659
    %674 = vmatmul.bf16.gmra.mxu0 %v664
    %v675 = vpop.f32.mrf.mxu0
    %v676 = vadd.f32 0.0, %v675
    %v677 = vpop.f32.mrf.mxu0
    %v678 = vadd.f32 0.0, %v677
    %679 = vdwg.mxu0
    %v680 = vadd.f32 %v46, %v676
    %v681 = vadd.f32 %v47, %v678
    %v682 = vld [vmem:[%s4] sm:$0x1]
    %v684 = vperm.slane %v682, 0
    %v686 = vadd.f32 %v680, %v684
    %v687 = vadd.f32 %v681, %v684
    %v688 = vsel %vm50, %v686, 0.0
    %689 = vadd.xlane.f32.xlu0 %v688
    %v690 = vpop.xlane.xlu0 %689
    %v691 = vsel %vm50, %v687, 0.0
    %692 = vadd.xlane.f32.xlu0 %v691
    %v693 = vpop.xlane.xlu0 %692
    %v694 = vmul.f32 %v690, %v63
    %v695 = vmul.f32 %v693, %v63
    %v696 = vsub.f32 %v686, %v694
    %v697 = vsub.f32 %v687, %v695
    %v698 = vmul.f32 %v696, %v696
    %v699 = vmul.f32 %v697, %v697
    %v700 = vsel %vm50, %v698, 0.0
    %701 = vadd.xlane.f32.xlu0 %v700
    %v702 = vpop.xlane.xlu0 %701
    %v703 = vsel %vm50, %v699, 0.0
    %704 = vadd.xlane.f32.xlu0 %v703
    %v705 = vpop.xlane.xlu0 %704
    %v706 = vmul.f32 %v702, 0.032258064
    %v707 = vmul.f32 %v705, 0.032258064
    %v708 = vrsqrt.pop %v706
    %v709 = vmul.f32 %v708, %v706
    %v710 = vmul.f32 %v709, %v708
    %v711 = vmul.f32 0.5, %v710
    %v712 = vsub.f32 1.5, %v711
    %v713 = vmul.f32 %v708, %v712
    %v714 = vmul.f32 %v706, %v713
    %vm715 = vcmp.eq.f32.partialorder %v706, inf
    %v716 = vsel %vm715, %v706, %v714
    %vm717 = vcmp.eq.f32.partialorder %v706, 0.0
    %v718 = vand.u32 %v706, 2147483648
    %v719 = vsel %vm717, %v718, %v716
    %v720 = vrsqrt.pop %v707
    %v721 = vmul.f32 %v720, %v707
    %v722 = vmul.f32 %v721, %v720
    %v723 = vmul.f32 0.5, %v722
    %v724 = vsub.f32 1.5, %v723
    %v725 = vmul.f32 %v720, %v724
    %v726 = vmul.f32 %v707, %v725
    %vm727 = vcmp.eq.f32.partialorder %v707, inf
    %v728 = vsel %vm727, %v707, %v726
    %vm729 = vcmp.eq.f32.partialorder %v707, 0.0
    %v730 = vand.u32 %v707, 2147483648
    %v731 = vsel %vm729, %v730, %v728
    %v732 = vadd.f32 %v719, 1e-06
    %v733 = vadd.f32 %v731, 1e-06
    %v734 = vrcp.pop %v732
    %v735 = vrcp.pop %v733
    %v736 = vperm.slane %v48, 1
    %v737 = vmul.f32 %v736, %v696
    %v738 = vmul.f32 %v736, %v697
    %v739 = vmul.f32 %v737, %v734
    %v740 = vmul.f32 %v738, %v735
    %v741 = vperm.slane %v49, 1
    %v742 = vadd.f32 %v739, %v741
    %v743 = vadd.f32 %v740, %v741
    %v744 = vld [vmem:[%s5] sm:$0xf]
    %v745 = vld [vmem:[%s5 + $0x4] sm:$0xf]
    %v746 = vld [vmem:[%s5 + $0x8] sm:$0xf]
    %v747 = vld [vmem:[%s5 + $0xc] sm:$0xf]
    %v748 = vpack.c.bf16 %v743, %v742
    %v749 = vld [vmem:[%s6] sm:$0x1]
    %v751 = vperm.slane %v749, 0
    %v757 = vunpack.c.l.b16 %v744
    %v758 = vunpack.c.l.b16 %v745
    %v759 = vunpack.c.l.b16 %v746
    %v760 = vunpack.c.l.b16 %v747
    %v761 = vpack.c.b16 %v758, %v757
    %v762 = vpack.c.b16 %v760, %v759
    %v766 = vsel %vm50, %v748, 0
    %768 = vmatpush.bf16.msra.mxu0 0
    %769 = vmatpush.bf16.msra.mxu0 0
    %770 = vmatpush.bf16.msra.mxu0 0
    %771 = vmatpush.bf16.msra.mxu0 0
    %772 = vmatpush.bf16.msra.mxu0 0
    %773 = vmatpush.bf16.msra.mxu0 0
    %774 = vmatpush.bf16.msra.mxu0 %v762
    %775 = vmatpush.bf16.msra.mxu0 %v761
    %776 = vmatmul.bf16.gmra.mxu0 %v766
    %v777 = vpop.f32.mrf.mxu0
    %v778 = vadd.f32 %v751, %v777
    %v779 = vpop.f32.mrf.mxu0
    %v780 = vadd.f32 %v751, %v779
    %781 = vdwg.mxu0
    %v782 = vmax.f32 %v778, 0.0
    %v783 = vmax.f32 %v780, 0.0
    %v784 = vld [vmem:[%s7] sm:$0xf]
    %v785 = vld [vmem:[%s7 + $0x4] sm:$0xf]
    %v786 = vld [vmem:[%s7 + $0x8] sm:$0xf]
    %v787 = vld [vmem:[%s7 + $0xc] sm:$0xf]
    %v788 = vld [vmem:[%s7 + $0x10] sm:$0xf]
    %v789 = vld [vmem:[%s7 + $0x14] sm:$0xf]
    %v790 = vld [vmem:[%s7 + $0x18] sm:$0xf]
    %v791 = vld [vmem:[%s7 + $0x1c] sm:$0xf]
    %v792 = vpack.c.bf16 %v783, %v782
    %v801 = vunpack.c.l.b16 %v784
    %v802 = vunpack.c.l.b16 %v785
    %v803 = vunpack.c.l.b16 %v786
    %v804 = vunpack.c.l.b16 %v787
    %v805 = vunpack.c.l.b16 %v788
    %v806 = vunpack.c.l.b16 %v789
    %v807 = vunpack.c.l.b16 %v790
    %v808 = vunpack.c.l.b16 %v791
    %v809 = vpack.c.b16 %v802, %v801
    %v810 = vpack.c.b16 %v804, %v803
    %v811 = vpack.c.b16 %v806, %v805
    %v812 = vpack.c.b16 %v808, %v807
    %vm817 = vcmask 523264
    %v819 = vsel %vm817, %v792, 0
    %821 = vmatpush.bf16.msra.mxu0 0
    %822 = vmatpush.bf16.msra.mxu0 0
    %823 = vmatpush.bf16.msra.mxu0 0
    %824 = vmatpush.bf16.msra.mxu0 0
    %825 = vmatpush.bf16.msra.mxu0 %v812
    %826 = vmatpush.bf16.msra.mxu0 %v811
    %827 = vmatpush.bf16.msra.mxu0 %v810
    %828 = vmatpush.bf16.msra.mxu0 %v809
    %829 = vmatmul.bf16.gmra.mxu0 %v819
    %v830 = vpop.f32.mrf.mxu0
    %v831 = vadd.f32 0.0, %v830
    %v832 = vpop.f32.mrf.mxu0
    %v833 = vadd.f32 0.0, %v832
    %834 = vdwg.mxu0
    %v835 = vadd.f32 %v686, %v831
    %v836 = vadd.f32 %v687, %v833
    %v837 = vld [vmem:[%s8] sm:$0x1]
    %v839 = vperm.slane %v837, 0
    %v841 = vadd.f32 %v835, %v839
    %v842 = vadd.f32 %v836, %v839
    %v843 = vsel %vm50, %v841, 0.0
    %844 = vadd.xlane.f32.xlu0 %v843
    %v845 = vpop.xlane.xlu0 %844
    %v846 = vsel %vm50, %v842, 0.0
    %847 = vadd.xlane.f32.xlu0 %v846
    %v848 = vpop.xlane.xlu0 %847
    %v849 = vmul.f32 %v845, %v63
    %v850 = vmul.f32 %v848, %v63
    %v851 = vsub.f32 %v841, %v849
    %v852 = vsub.f32 %v842, %v850
    %v853 = vmul.f32 %v851, %v851
    %v854 = vmul.f32 %v852, %v852
    %v855 = vsel %vm50, %v853, 0.0
    %856 = vadd.xlane.f32.xlu0 %v855
    %v857 = vpop.xlane.xlu0 %856
    %v858 = vsel %vm50, %v854, 0.0
    %859 = vadd.xlane.f32.xlu0 %v858
    %v860 = vpop.xlane.xlu0 %859
    %v861 = vmul.f32 %v857, 0.032258064
    %v862 = vmul.f32 %v860, 0.032258064
    %v863 = vrsqrt.pop %v861
    %v864 = vmul.f32 %v863, %v861
    %v865 = vmul.f32 %v864, %v863
    %v866 = vmul.f32 0.5, %v865
    %v867 = vsub.f32 1.5, %v866
    %v868 = vmul.f32 %v863, %v867
    %v869 = vmul.f32 %v861, %v868
    %vm870 = vcmp.eq.f32.partialorder %v861, inf
    %v871 = vsel %vm870, %v861, %v869
    %vm872 = vcmp.eq.f32.partialorder %v861, 0.0
    %v873 = vand.u32 %v861, 2147483648
    %v874 = vsel %vm872, %v873, %v871
    %v875 = vrsqrt.pop %v862
    %v876 = vmul.f32 %v875, %v862
    %v877 = vmul.f32 %v876, %v875
    %v878 = vmul.f32 0.5, %v877
    %v879 = vsub.f32 1.5, %v878
    %v880 = vmul.f32 %v875, %v879
    %v881 = vmul.f32 %v862, %v880
    %vm882 = vcmp.eq.f32.partialorder %v862, inf
    %v883 = vsel %vm882, %v862, %v881
    %vm884 = vcmp.eq.f32.partialorder %v862, 0.0
    %v885 = vand.u32 %v862, 2147483648
    %v886 = vsel %vm884, %v885, %v883
    %v887 = vadd.f32 %v874, 1e-06
    %v888 = vadd.f32 %v886, 1e-06
    %v889 = vrcp.pop %v887
    %v890 = vrcp.pop %v888
    %v891 = vperm.slane %v48, 2
    %v892 = vmul.f32 %v891, %v851
    %v893 = vmul.f32 %v891, %v852
    %v894 = vmul.f32 %v892, %v889
    %v895 = vmul.f32 %v893, %v890
    %v896 = vperm.slane %v49, 2
    %v897 = vadd.f32 %v894, %v896
    %v898 = vadd.f32 %v895, %v896
    %s899 = scalar_lea.vmem %s1, 16
    %v900 = vld [vmem:[%s899] sm:$0xf]
    %v901 = vld [vmem:[%s899 + $0x4] sm:$0xf]
    %v902 = vld [vmem:[%s899 + $0x8] sm:$0xf]
    %v903 = vld [vmem:[%s899 + $0xc] sm:$0xf]
    %v904 = vpack.c.bf16 %v898, %v897
    %s905 = scalar_lea.vmem %s2, 1
    %v906 = vld [vmem:[%s905] sm:$0x1]
    %v908 = vperm.slane %v906, 0
    %v914 = vunpack.c.l.b16 %v900
    %v915 = vunpack.c.l.b16 %v901
    %v916 = vunpack.c.l.b16 %v902
    %v917 = vunpack.c.l.b16 %v903
    %v918 = vpack.c.b16 %v915, %v914
    %v919 = vpack.c.b16 %v917, %v916
    %v923 = vsel %vm50, %v904, 0
    %925 = vmatpush.bf16.msra.mxu0 0
    %926 = vmatpush.bf16.msra.mxu0 0
    %927 = vmatpush.bf16.msra.mxu0 0
    %928 = vmatpush.bf16.msra.mxu0 0
    %929 = vmatpush.bf16.msra.mxu0 0
    %930 = vmatpush.bf16.msra.mxu0 0
    %931 = vmatpush.bf16.msra.mxu0 %v919
    %932 = vmatpush.bf16.msra.mxu0 %v918
    %933 = vmatmul.bf16.gmra.mxu0 %v923
    %v934 = vpop.f32.mrf.mxu0
    %v935 = vadd.f32 %v908, %v934
    %v936 = vpop.f32.mrf.mxu0
    %v937 = vadd.f32 %v908, %v936
    %938 = vdwg.mxu0
    %v939 = vpack.c.bf16 %v935, %v935
    %v940 = vpack.c.bf16 %v937, %v937
    %v942 = vunpack.c.l.b16 %v939
    %v943 = vpack.c.b16 %v942, %v942
    %944 = vrot.lane.b32.xlu0 %v943, 96
    %v945 = vpop.permute.xlu0 %944
    %v947 = vsel %vm159, %v939, 0
    %v950 = vsel %vm159, %v945, 0
    %952 = vmatpush.bf16.xpose.msra.mxu0 0
    %953 = vmatpush.bf16.xpose.msra.mxu0 0
    %954 = vmatpush.bf16.xpose.msra.mxu0 0
    %955 = vmatpush.bf16.xpose.msra.mxu0 0
    %956 = vmatpush.bf16.xpose.msra.mxu0 0
    %957 = vmatpush.bf16.xpose.msra.mxu0 0
    %958 = vmatpush.bf16.xpose.msra.mxu0 0
    %959 = vmatpush.bf16.xpose.msra.mxu0 %v950
    %960 = vmatmul.bf16.gmra.mxu0 %v947
    %v961 = vpop.f32.mrf.mxu0
    %v962 = vadd.f32 0.0, %v961
    %v963 = vpop.f32.mrf.mxu0
    %964 = vdwg.mxu0
    %v966 = vunpack.c.l.b16 %v940
    %v967 = vpack.c.b16 %v966, %v966
    %968 = vrot.lane.b32.xlu0 %v967, 96
    %v969 = vpop.permute.xlu0 %968
    %v971 = vsel %vm159, %v940, 0
    %v974 = vsel %vm159, %v969, 0
    %976 = vmatpush.bf16.xpose.msra.mxu0 0
    %977 = vmatpush.bf16.xpose.msra.mxu0 0
    %978 = vmatpush.bf16.xpose.msra.mxu0 0
    %979 = vmatpush.bf16.xpose.msra.mxu0 0
    %980 = vmatpush.bf16.xpose.msra.mxu0 0
    %981 = vmatpush.bf16.xpose.msra.mxu0 0
    %982 = vmatpush.bf16.xpose.msra.mxu0 0
    %983 = vmatpush.bf16.xpose.msra.mxu0 %v974
    %984 = vmatmul.bf16.gmra.mxu0 %v971
    %v985 = vpop.f32.mrf.mxu0
    %v986 = vadd.f32 0.0, %v985
    %v987 = vpop.f32.mrf.mxu0
    %988 = vdwg.mxu0
    %v989 = vmul.f32 %v962, 0.35355338
    %v990 = vmul.f32 %v986, 0.35355338
    %v991 = vsel %vm159, %v989, -inf
    %992 = vmax.xlane.f32.xlu0 %v991
    %v993 = vpop.xlane.xlu0 %992
    %v994 = vsel %vm159, %v990, -inf
    %995 = vmax.xlane.f32.xlu0 %v994
    %v996 = vpop.xlane.xlu0 %995
    %v997 = vsub.f32 %v989, %v993
    %v998 = vsub.f32 %v990, %v996
    %v999 = vmul.f32 %v997, 1.442695
    %v1000 = vpow.pop %v999
    %v1001 = vmul.f32 %v998, 1.442695
    %v1002 = vpow.pop %v1001
    %v1003 = vsel %vm159, %v1000, 0.0
    %1004 = vadd.xlane.f32.xlu0 %v1003
    %v1005 = vpop.xlane.xlu0 %1004
    %v1006 = vsel %vm159, %v1002, 0.0
    %1007 = vadd.xlane.f32.xlu0 %v1006
    %v1008 = vpop.xlane.xlu0 %1007
    %v1009 = vrcp.pop %v1005
    %v1010 = vrcp.pop %v1008
    %v1011 = vmul.f32 %v1000, %v1009
    %v1012 = vmul.f32 %v1002, %v1010
    %v1013 = vpack.c.bf16 %v1011, %v1011
    %v1014 = vpack.c.bf16 %v1012, %v1012
    %1015 = vrot.lane.b32.xlu0 %v943, 64
    %v1016 = vpop.permute.xlu0 %1015
    %v1018 = vsel %vm159, %v1013, 0
    %v1021 = vsel %vm234, %v1016, 0
    %1023 = vmatpush.bf16.msra.mxu0 0
    %1024 = vmatpush.bf16.msra.mxu0 0
    %1025 = vmatpush.bf16.msra.mxu0 0
    %1026 = vmatpush.bf16.msra.mxu0 0
    %1027 = vmatpush.bf16.msra.mxu0 0
    %1028 = vmatpush.bf16.msra.mxu0 0
    %1029 = vmatpush.bf16.msra.mxu0 0
    %1030 = vmatpush.bf16.msra.mxu0 %v1021
    %1031 = vmatmul.bf16.gmra.mxu0 %v1018
    %v1032 = vpop.f32.mrf.mxu0
    %v1033 = vadd.f32 0.0, %v1032
    %v1034 = vpop.f32.mrf.mxu0
    %1035 = vdwg.mxu0
    %1036 = vrot.lane.b32.xlu0 %v967, 64
    %v1037 = vpop.permute.xlu0 %1036
    %v1039 = vsel %vm159, %v1014, 0
    %v1042 = vsel %vm234, %v1037, 0
    %1044 = vmatpush.bf16.msra.mxu0 0
    %1045 = vmatpush.bf16.msra.mxu0 0
    %1046 = vmatpush.bf16.msra.mxu0 0
    %1047 = vmatpush.bf16.msra.mxu0 0
    %1048 = vmatpush.bf16.msra.mxu0 0
    %1049 = vmatpush.bf16.msra.mxu0 0
    %1050 = vmatpush.bf16.msra.mxu0 0
    %1051 = vmatpush.bf16.msra.mxu0 %v1042
    %1052 = vmatmul.bf16.gmra.mxu0 %v1039
    %v1053 = vpop.f32.mrf.mxu0
    %v1054 = vadd.f32 0.0, %v1053
    %v1055 = vpop.f32.mrf.mxu0
    %1056 = vdwg.mxu0
    %1057 = vrot.lane.b32.xlu0 %v943, 120
    %v1058 = vpop.permute.xlu0 %1057
    %1059 = vrot.lane.b32.xlu0 %v943, 88
    %v1060 = vpop.permute.xlu0 %1059
    %v1062 = vsel %vm159, %v1058, 0
    %v1065 = vsel %vm159, %v1060, 0
    %1067 = vmatpush.bf16.xpose.msra.mxu0 0
    %1068 = vmatpush.bf16.xpose.msra.mxu0 0
    %1069 = vmatpush.bf16.xpose.msra.mxu0 0
    %1070 = vmatpush.bf16.xpose.msra.mxu0 0
    %1071 = vmatpush.bf16.xpose.msra.mxu0 0
    %1072 = vmatpush.bf16.xpose.msra.mxu0 0
    %1073 = vmatpush.bf16.xpose.msra.mxu0 0
    %1074 = vmatpush.bf16.xpose.msra.mxu0 %v1065
    %1075 = vmatmul.bf16.gmra.mxu0 %v1062
    %v1076 = vpop.f32.mrf.mxu0
    %v1077 = vadd.f32 0.0, %v1076
    %v1078 = vpop.f32.mrf.mxu0
    %1079 = vdwg.mxu0
    %1080 = vrot.lane.b32.xlu0 %v967, 120
    %v1081 = vpop.permute.xlu0 %1080
    %1082 = vrot.lane.b32.xlu0 %v967, 88
    %v1083 = vpop.permute.xlu0 %1082
    %v1085 = vsel %vm159, %v1081, 0
    %v1088 = vsel %vm159, %v1083, 0
    %1090 = vmatpush.bf16.xpose.msra.mxu0 0
    %1091 = vmatpush.bf16.xpose.msra.mxu0 0
    %1092 = vmatpush.bf16.xpose.msra.mxu0 0
    %1093 = vmatpush.bf16.xpose.msra.mxu0 0
    %1094 = vmatpush.bf16.xpose.msra.mxu0 0
    %1095 = vmatpush.bf16.xpose.msra.mxu0 0
    %1096 = vmatpush.bf16.xpose.msra.mxu0 0
    %1097 = vmatpush.bf16.xpose.msra.mxu0 %v1088
    %1098 = vmatmul.bf16.gmra.mxu0 %v1085
    %v1099 = vpop.f32.mrf.mxu0
    %v1100 = vadd.f32 0.0, %v1099
    %v1101 = vpop.f32.mrf.mxu0
    %1102 = vdwg.mxu0
    %v1103 = vmul.f32 %v1077, 0.35355338
    %v1104 = vmul.f32 %v1100, 0.35355338
    %v1105 = vsel %vm159, %v1103, -inf
    %1106 = vmax.xlane.f32.xlu0 %v1105
    %v1107 = vpop.xlane.xlu0 %1106
    %v1108 = vsel %vm159, %v1104, -inf
    %1109 = vmax.xlane.f32.xlu0 %v1108
    %v1110 = vpop.xlane.xlu0 %1109
    %v1111 = vsub.f32 %v1103, %v1107
    %v1112 = vsub.f32 %v1104, %v1110
    %v1113 = vmul.f32 %v1111, 1.442695
    %v1114 = vpow.pop %v1113
    %v1115 = vmul.f32 %v1112, 1.442695
    %v1116 = vpow.pop %v1115
    %v1117 = vsel %vm159, %v1114, 0.0
    %1118 = vadd.xlane.f32.xlu0 %v1117
    %v1119 = vpop.xlane.xlu0 %1118
    %v1120 = vsel %vm159, %v1116, 0.0
    %1121 = vadd.xlane.f32.xlu0 %v1120
    %v1122 = vpop.xlane.xlu0 %1121
    %v1123 = vrcp.pop %v1119
    %v1124 = vrcp.pop %v1122
    %v1125 = vmul.f32 %v1114, %v1123
    %v1126 = vmul.f32 %v1116, %v1124
    %v1127 = vpack.c.bf16 %v1125, %v1125
    %v1128 = vpack.c.bf16 %v1126, %v1126
    %1129 = vrot.lane.b32.xlu0 %v943, 56
    %v1130 = vpop.permute.xlu0 %1129
    %v1132 = vsel %vm159, %v1127, 0
    %v1135 = vsel %vm234, %v1130, 0
    %1137 = vmatpush.bf16.msra.mxu0 0
    %1138 = vmatpush.bf16.msra.mxu0 0
    %1139 = vmatpush.bf16.msra.mxu0 0
    %1140 = vmatpush.bf16.msra.mxu0 0
    %1141 = vmatpush.bf16.msra.mxu0 0
    %1142 = vmatpush.bf16.msra.mxu0 0
    %1143 = vmatpush.bf16.msra.mxu0 0
    %1144 = vmatpush.bf16.msra.mxu0 %v1135
    %1145 = vmatmul.bf16.gmra.mxu0 %v1132
    %v1146 = vpop.f32.mrf.mxu0
    %v1147 = vadd.f32 0.0, %v1146
    %v1148 = vpop.f32.mrf.mxu0
    %1149 = vdwg.mxu0
    %1150 = vrot.lane.b32.xlu0 %v967, 56
    %v1151 = vpop.permute.xlu0 %1150
    %v1153 = vsel %vm159, %v1128, 0
    %v1156 = vsel %vm234, %v1151, 0
    %1158 = vmatpush.bf16.msra.mxu0 0
    %1159 = vmatpush.bf16.msra.mxu0 0
    %1160 = vmatpush.bf16.msra.mxu0 0
    %1161 = vmatpush.bf16.msra.mxu0 0
    %1162 = vmatpush.bf16.msra.mxu0 0
    %1163 = vmatpush.bf16.msra.mxu0 0
    %1164 = vmatpush.bf16.msra.mxu0 0
    %1165 = vmatpush.bf16.msra.mxu0 %v1156
    %1166 = vmatmul.bf16.gmra.mxu0 %v1153
    %v1167 = vpop.f32.mrf.mxu0
    %v1168 = vadd.f32 0.0, %v1167
    %v1169 = vpop.f32.mrf.mxu0
    %1170 = vdwg.mxu0
    %1171 = vrot.lane.b32.xlu0 %v943, 112
    %v1172 = vpop.permute.xlu0 %1171
    %1173 = vrot.lane.b32.xlu0 %v943, 80
    %v1174 = vpop.permute.xlu0 %1173
    %v1176 = vsel %vm159, %v1172, 0
    %v1179 = vsel %vm159, %v1174, 0
    %1181 = vmatpush.bf16.xpose.msra.mxu0 0
    %1182 = vmatpush.bf16.xpose.msra.mxu0 0
    %1183 = vmatpush.bf16.xpose.msra.mxu0 0
    %1184 = vmatpush.bf16.xpose.msra.mxu0 0
    %1185 = vmatpush.bf16.xpose.msra.mxu0 0
    %1186 = vmatpush.bf16.xpose.msra.mxu0 0
    %1187 = vmatpush.bf16.xpose.msra.mxu0 0
    %1188 = vmatpush.bf16.xpose.msra.mxu0 %v1179
    %1189 = vmatmul.bf16.gmra.mxu0 %v1176
    %v1190 = vpop.f32.mrf.mxu0
    %v1191 = vadd.f32 0.0, %v1190
    %v1192 = vpop.f32.mrf.mxu0
    %1193 = vdwg.mxu0
    %1194 = vrot.lane.b32.xlu0 %v967, 112
    %v1195 = vpop.permute.xlu0 %1194
    %1196 = vrot.lane.b32.xlu0 %v967, 80
    %v1197 = vpop.permute.xlu0 %1196
    %v1199 = vsel %vm159, %v1195, 0
    %v1202 = vsel %vm159, %v1197, 0
    %1204 = vmatpush.bf16.xpose.msra.mxu0 0
    %1205 = vmatpush.bf16.xpose.msra.mxu0 0
    %1206 = vmatpush.bf16.xpose.msra.mxu0 0
    %1207 = vmatpush.bf16.xpose.msra.mxu0 0
    %1208 = vmatpush.bf16.xpose.msra.mxu0 0
    %1209 = vmatpush.bf16.xpose.msra.mxu0 0
    %1210 = vmatpush.bf16.xpose.msra.mxu0 0
    %1211 = vmatpush.bf16.xpose.msra.mxu0 %v1202
    %1212 = vmatmul.bf16.gmra.mxu0 %v1199
    %v1213 = vpop.f32.mrf.mxu0
    %v1214 = vadd.f32 0.0, %v1213
    %v1215 = vpop.f32.mrf.mxu0
    %1216 = vdwg.mxu0
    %v1217 = vmul.f32 %v1191, 0.35355338
    %v1218 = vmul.f32 %v1214, 0.35355338
    %v1219 = vsel %vm159, %v1217, -inf
    %1220 = vmax.xlane.f32.xlu0 %v1219
    %v1221 = vpop.xlane.xlu0 %1220
    %v1222 = vsel %vm159, %v1218, -inf
    %1223 = vmax.xlane.f32.xlu0 %v1222
    %v1224 = vpop.xlane.xlu0 %1223
    %v1225 = vsub.f32 %v1217, %v1221
    %v1226 = vsub.f32 %v1218, %v1224
    %v1227 = vmul.f32 %v1225, 1.442695
    %v1228 = vpow.pop %v1227
    %v1229 = vmul.f32 %v1226, 1.442695
    %v1230 = vpow.pop %v1229
    %v1231 = vsel %vm159, %v1228, 0.0
    %1232 = vadd.xlane.f32.xlu0 %v1231
    %v1233 = vpop.xlane.xlu0 %1232
    %v1234 = vsel %vm159, %v1230, 0.0
    %1235 = vadd.xlane.f32.xlu0 %v1234
    %v1236 = vpop.xlane.xlu0 %1235
    %v1237 = vrcp.pop %v1233
    %v1238 = vrcp.pop %v1236
    %v1239 = vmul.f32 %v1228, %v1237
    %v1240 = vmul.f32 %v1230, %v1238
    %v1241 = vpack.c.bf16 %v1239, %v1239
    %v1242 = vpack.c.bf16 %v1240, %v1240
    %1243 = vrot.lane.b32.xlu0 %v943, 48
    %v1244 = vpop.permute.xlu0 %1243
    %v1246 = vsel %vm159, %v1241, 0
    %v1249 = vsel %vm234, %v1244, 0
    %1251 = vmatpush.bf16.msra.mxu0 0
    %1252 = vmatpush.bf16.msra.mxu0 0
    %1253 = vmatpush.bf16.msra.mxu0 0
    %1254 = vmatpush.bf16.msra.mxu0 0
    %1255 = vmatpush.bf16.msra.mxu0 0
    %1256 = vmatpush.bf16.msra.mxu0 0
    %1257 = vmatpush.bf16.msra.mxu0 0
    %1258 = vmatpush.bf16.msra.mxu0 %v1249
    %1259 = vmatmul.bf16.gmra.mxu0 %v1246
    %v1260 = vpop.f32.mrf.mxu0
    %v1261 = vadd.f32 0.0, %v1260
    %v1262 = vpop.f32.mrf.mxu0
    %1263 = vdwg.mxu0
    %1264 = vrot.lane.b32.xlu0 %v967, 48
    %v1265 = vpop.permute.xlu0 %1264
    %v1267 = vsel %vm159, %v1242, 0
    %v1270 = vsel %vm234, %v1265, 0
    %1272 = vmatpush.bf16.msra.mxu0 0
    %1273 = vmatpush.bf16.msra.mxu0 0
    %1274 = vmatpush.bf16.msra.mxu0 0
    %1275 = vmatpush.bf16.msra.mxu0 0
    %1276 = vmatpush.bf16.msra.mxu0 0
    %1277 = vmatpush.bf16.msra.mxu0 0
    %1278 = vmatpush.bf16.msra.mxu0 0
    %1279 = vmatpush.bf16.msra.mxu0 %v1270
    %1280 = vmatmul.bf16.gmra.mxu0 %v1267
    %v1281 = vpop.f32.mrf.mxu0
    %v1282 = vadd.f32 0.0, %v1281
    %v1283 = vpop.f32.mrf.mxu0
    %1284 = vdwg.mxu0
    %1285 = vrot.lane.b32.xlu0 %v943, 104
    %v1286 = vpop.permute.xlu0 %1285
    %1287 = vrot.lane.b32.xlu0 %v943, 72
    %v1288 = vpop.permute.xlu0 %1287
    %v1290 = vsel %vm159, %v1286, 0
    %v1293 = vsel %vm159, %v1288, 0
    %1295 = vmatpush.bf16.xpose.msra.mxu0 0
    %1296 = vmatpush.bf16.xpose.msra.mxu0 0
    %1297 = vmatpush.bf16.xpose.msra.mxu0 0
    %1298 = vmatpush.bf16.xpose.msra.mxu0 0
    %1299 = vmatpush.bf16.xpose.msra.mxu0 0
    %1300 = vmatpush.bf16.xpose.msra.mxu0 0
    %1301 = vmatpush.bf16.xpose.msra.mxu0 0
    %1302 = vmatpush.bf16.xpose.msra.mxu0 %v1293
    %1303 = vmatmul.bf16.gmra.mxu0 %v1290
    %v1304 = vpop.f32.mrf.mxu0
    %v1305 = vadd.f32 0.0, %v1304
    %v1306 = vpop.f32.mrf.mxu0
    %1307 = vdwg.mxu0
    %1308 = vrot.lane.b32.xlu0 %v967, 104
    %v1309 = vpop.permute.xlu0 %1308
    %1310 = vrot.lane.b32.xlu0 %v967, 72
    %v1311 = vpop.permute.xlu0 %1310
    %v1313 = vsel %vm159, %v1309, 0
    %v1316 = vsel %vm159, %v1311, 0
    %1318 = vmatpush.bf16.xpose.msra.mxu0 0
    %1319 = vmatpush.bf16.xpose.msra.mxu0 0
    %1320 = vmatpush.bf16.xpose.msra.mxu0 0
    %1321 = vmatpush.bf16.xpose.msra.mxu0 0
    %1322 = vmatpush.bf16.xpose.msra.mxu0 0
    %1323 = vmatpush.bf16.xpose.msra.mxu0 0
    %1324 = vmatpush.bf16.xpose.msra.mxu0 0
    %1325 = vmatpush.bf16.xpose.msra.mxu0 %v1316
    %1326 = vmatmul.bf16.gmra.mxu0 %v1313
    %v1327 = vpop.f32.mrf.mxu0
    %v1328 = vadd.f32 0.0, %v1327
    %v1329 = vpop.f32.mrf.mxu0
    %1330 = vdwg.mxu0
    %v1331 = vmul.f32 %v1305, 0.35355338
    %v1332 = vmul.f32 %v1328, 0.35355338
    %v1333 = vsel %vm159, %v1331, -inf
    %1334 = vmax.xlane.f32.xlu0 %v1333
    %v1335 = vpop.xlane.xlu0 %1334
    %v1336 = vsel %vm159, %v1332, -inf
    %1337 = vmax.xlane.f32.xlu0 %v1336
    %v1338 = vpop.xlane.xlu0 %1337
    %v1339 = vsub.f32 %v1331, %v1335
    %v1340 = vsub.f32 %v1332, %v1338
    %v1341 = vmul.f32 %v1339, 1.442695
    %v1342 = vpow.pop %v1341
    %v1343 = vmul.f32 %v1340, 1.442695
    %v1344 = vpow.pop %v1343
    %v1345 = vsel %vm159, %v1342, 0.0
    %1346 = vadd.xlane.f32.xlu0 %v1345
    %v1347 = vpop.xlane.xlu0 %1346
    %v1348 = vsel %vm159, %v1344, 0.0
    %1349 = vadd.xlane.f32.xlu0 %v1348
    %v1350 = vpop.xlane.xlu0 %1349
    %v1351 = vrcp.pop %v1347
    %v1352 = vrcp.pop %v1350
    %v1353 = vmul.f32 %v1342, %v1351
    %v1354 = vmul.f32 %v1344, %v1352
    %v1355 = vpack.c.bf16 %v1353, %v1353
    %v1356 = vpack.c.bf16 %v1354, %v1354
    %1357 = vrot.lane.b32.xlu0 %v943, 40
    %v1358 = vpop.permute.xlu0 %1357
    %v1360 = vsel %vm159, %v1355, 0
    %v1363 = vsel %vm234, %v1358, 0
    %1365 = vmatpush.bf16.msra.mxu0 0
    %1366 = vmatpush.bf16.msra.mxu0 0
    %1367 = vmatpush.bf16.msra.mxu0 0
    %1368 = vmatpush.bf16.msra.mxu0 0
    %1369 = vmatpush.bf16.msra.mxu0 0
    %1370 = vmatpush.bf16.msra.mxu0 0
    %1371 = vmatpush.bf16.msra.mxu0 0
    %1372 = vmatpush.bf16.msra.mxu0 %v1363
    %1373 = vmatmul.bf16.gmra.mxu0 %v1360
    %v1374 = vpop.f32.mrf.mxu0
    %v1375 = vadd.f32 0.0, %v1374
    %v1376 = vpop.f32.mrf.mxu0
    %1377 = vdwg.mxu0
    %1378 = vrot.lane.b32.xlu0 %v967, 40
    %v1379 = vpop.permute.xlu0 %1378
    %v1381 = vsel %vm159, %v1356, 0
    %v1384 = vsel %vm234, %v1379, 0
    %1386 = vmatpush.bf16.msra.mxu0 0
    %1387 = vmatpush.bf16.msra.mxu0 0
    %1388 = vmatpush.bf16.msra.mxu0 0
    %1389 = vmatpush.bf16.msra.mxu0 0
    %1390 = vmatpush.bf16.msra.mxu0 0
    %1391 = vmatpush.bf16.msra.mxu0 0
    %1392 = vmatpush.bf16.msra.mxu0 0
    %1393 = vmatpush.bf16.msra.mxu0 %v1384
    %1394 = vmatmul.bf16.gmra.mxu0 %v1381
    %v1395 = vpop.f32.mrf.mxu0
    %v1396 = vadd.f32 0.0, %v1395
    %v1397 = vpop.f32.mrf.mxu0
    %1398 = vdwg.mxu0
    %1401 = vrot.lane.b32.xlu0 %v1147, 8
    %v1402 = vpop.permute.xlu0 %1401
    %1403 = vrot.lane.b32.xlu0 %v1168, 8
    %v1404 = vpop.permute.xlu0 %1403
    %1409 = vrot.lane.b32.xlu0 %v1261, 16
    %v1410 = vpop.permute.xlu0 %1409
    %1411 = vrot.lane.b32.xlu0 %v1282, 16
    %v1412 = vpop.permute.xlu0 %1411
    %1417 = vrot.lane.b32.xlu0 %v1375, 24
    %v1418 = vpop.permute.xlu0 %1417
    %1419 = vrot.lane.b32.xlu0 %v1396, 24
    %v1420 = vpop.permute.xlu0 %1419
    %v1423 = vsel %vm159, %v1033, %v1402
    %v1424 = vsel %vm159, %v1054, %v1404
    %v1425 = vsel %vm640, %v1423, %v1410
    %v1426 = vsel %vm640, %v1424, %v1412
    %v1427 = vsel %vm643, %v1425, %v1418
    %v1428 = vsel %vm643, %v1426, %v1420
    %s1429 = scalar_lea.vmem %s3, 16
    %v1430 = vld [vmem:[%s1429] sm:$0xf]
    %v1431 = vld [vmem:[%s1429 + $0x4] sm:$0xf]
    %v1432 = vld [vmem:[%s1429 + $0x8] sm:$0xf]
    %v1433 = vld [vmem:[%s1429 + $0xc] sm:$0xf]
    %v1434 = vpack.c.bf16 %v1428, %v1427
    %v1439 = vunpack.c.l.b16 %v1430
    %v1440 = vunpack.c.l.b16 %v1431
    %v1441 = vunpack.c.l.b16 %v1432
    %v1442 = vunpack.c.l.b16 %v1433
    %v1443 = vpack.c.b16 %v1440, %v1439
    %v1444 = vpack.c.b16 %v1442, %v1441
    %v1448 = vsel %vm50, %v1434, 0
    %1450 = vmatpush.bf16.msra.mxu0 0
    %1451 = vmatpush.bf16.msra.mxu0 0
    %1452 = vmatpush.bf16.msra.mxu0 0
    %1453 = vmatpush.bf16.msra.mxu0 0
    %1454 = vmatpush.bf16.msra.mxu0 0
    %1455 = vmatpush.bf16.msra.mxu0 0
    %1456 = vmatpush.bf16.msra.mxu0 %v1444
    %1457 = vmatpush.bf16.msra.mxu0 %v1443
    %1458 = vmatmul.bf16.gmra.mxu0 %v1448
    %v1459 = vpop.f32.mrf.mxu0
    %v1460 = vadd.f32 0.0, %v1459
    %v1461 = vpop.f32.mrf.mxu0
    %v1462 = vadd.f32 0.0, %v1461
    %1463 = vdwg.mxu0
    %v1464 = vadd.f32 %v841, %v1460
    %v1465 = vadd.f32 %v842, %v1462
    %s1466 = scalar_lea.vmem %s4, 1
    %v1467 = vld [vmem:[%s1466] sm:$0x1]
    %v1469 = vperm.slane %v1467, 0
    %v1471 = vadd.f32 %v1464, %v1469
    %v1472 = vadd.f32 %v1465, %v1469
    %v1473 = vsel %vm50, %v1471, 0.0
    %1474 = vadd.xlane.f32.xlu0 %v1473
    %v1475 = vpop.xlane.xlu0 %1474
    %v1476 = vsel %vm50, %v1472, 0.0
    %1477 = vadd.xlane.f32.xlu0 %v1476
    %v1478 = vpop.xlane.xlu0 %1477
    %v1479 = vmul.f32 %v1475, %v63
    %v1480 = vmul.f32 %v1478, %v63
    %v1481 = vsub.f32 %v1471, %v1479
    %v1482 = vsub.f32 %v1472, %v1480
    %v1483 = vmul.f32 %v1481, %v1481
    %v1484 = vmul.f32 %v1482, %v1482
    %v1485 = vsel %vm50, %v1483, 0.0
    %1486 = vadd.xlane.f32.xlu0 %v1485
    %v1487 = vpop.xlane.xlu0 %1486
    %v1488 = vsel %vm50, %v1484, 0.0
    %1489 = vadd.xlane.f32.xlu0 %v1488
    %v1490 = vpop.xlane.xlu0 %1489
    %v1491 = vmul.f32 %v1487, 0.032258064
    %v1492 = vmul.f32 %v1490, 0.032258064
    %v1493 = vrsqrt.pop %v1491
    %v1494 = vmul.f32 %v1493, %v1491
    %v1495 = vmul.f32 %v1494, %v1493
    %v1496 = vmul.f32 0.5, %v1495
    %v1497 = vsub.f32 1.5, %v1496
    %v1498 = vmul.f32 %v1493, %v1497
    %v1499 = vmul.f32 %v1491, %v1498
    %vm1500 = vcmp.eq.f32.partialorder %v1491, inf
    %v1501 = vsel %vm1500, %v1491, %v1499
    %vm1502 = vcmp.eq.f32.partialorder %v1491, 0.0
    %v1503 = vand.u32 %v1491, 2147483648
    %v1504 = vsel %vm1502, %v1503, %v1501
    %v1505 = vrsqrt.pop %v1492
    %v1506 = vmul.f32 %v1505, %v1492
    %v1507 = vmul.f32 %v1506, %v1505
    %v1508 = vmul.f32 0.5, %v1507
    %v1509 = vsub.f32 1.5, %v1508
    %v1510 = vmul.f32 %v1505, %v1509
    %v1511 = vmul.f32 %v1492, %v1510
    %vm1512 = vcmp.eq.f32.partialorder %v1492, inf
    %v1513 = vsel %vm1512, %v1492, %v1511
    %vm1514 = vcmp.eq.f32.partialorder %v1492, 0.0
    %v1515 = vand.u32 %v1492, 2147483648
    %v1516 = vsel %vm1514, %v1515, %v1513
    %v1517 = vadd.f32 %v1504, 1e-06
    %v1518 = vadd.f32 %v1516, 1e-06
    %v1519 = vrcp.pop %v1517
    %v1520 = vrcp.pop %v1518
    %v1521 = vperm.slane %v48, 3
    %v1522 = vmul.f32 %v1521, %v1481
    %v1523 = vmul.f32 %v1521, %v1482
    %v1524 = vmul.f32 %v1522, %v1519
    %v1525 = vmul.f32 %v1523, %v1520
    %v1526 = vperm.slane %v49, 3
    %v1527 = vadd.f32 %v1524, %v1526
    %v1528 = vadd.f32 %v1525, %v1526
    %s1529 = scalar_lea.vmem %s5, 16
    %v1530 = vld [vmem:[%s1529] sm:$0xf]
    %v1531 = vld [vmem:[%s1529 + $0x4] sm:$0xf]
    %v1532 = vld [vmem:[%s1529 + $0x8] sm:$0xf]
    %v1533 = vld [vmem:[%s1529 + $0xc] sm:$0xf]
    %v1534 = vpack.c.bf16 %v1528, %v1527
    %s1535 = scalar_lea.vmem %s6, 1
    %v1536 = vld [vmem:[%s1535] sm:$0x1]
    %v1538 = vperm.slane %v1536, 0
    %v1544 = vunpack.c.l.b16 %v1530
    %v1545 = vunpack.c.l.b16 %v1531
    %v1546 = vunpack.c.l.b16 %v1532
    %v1547 = vunpack.c.l.b16 %v1533
    %v1548 = vpack.c.b16 %v1545, %v1544
    %v1549 = vpack.c.b16 %v1547, %v1546
    %v1553 = vsel %vm50, %v1534, 0
    %1555 = vmatpush.bf16.msra.mxu0 0
    %1556 = vmatpush.bf16.msra.mxu0 0
    %1557 = vmatpush.bf16.msra.mxu0 0
    %1558 = vmatpush.bf16.msra.mxu0 0
    %1559 = vmatpush.bf16.msra.mxu0 0
    %1560 = vmatpush.bf16.msra.mxu0 0
    %1561 = vmatpush.bf16.msra.mxu0 %v1549
    %1562 = vmatpush.bf16.msra.mxu0 %v1548
    %1563 = vmatmul.bf16.gmra.mxu0 %v1553
    %v1564 = vpop.f32.mrf.mxu0
    %v1565 = vadd.f32 %v1538, %v1564
    %v1566 = vpop.f32.mrf.mxu0
    %v1567 = vadd.f32 %v1538, %v1566
    %1568 = vdwg.mxu0
    %v1569 = vmax.f32 %v1565, 0.0
    %v1570 = vmax.f32 %v1567, 0.0
    %s1571 = scalar_lea.vmem %s7, 32
    %v1572 = vld [vmem:[%s1571] sm:$0xf]
    %v1573 = vld [vmem:[%s1571 + $0x4] sm:$0xf]
    %v1574 = vld [vmem:[%s1571 + $0x8] sm:$0xf]
    %v1575 = vld [vmem:[%s1571 + $0xc] sm:$0xf]
    %v1576 = vld [vmem:[%s1571 + $0x10] sm:$0xf]
    %v1577 = vld [vmem:[%s1571 + $0x14] sm:$0xf]
    %v1578 = vld [vmem:[%s1571 + $0x18] sm:$0xf]
    %v1579 = vld [vmem:[%s1571 + $0x1c] sm:$0xf]
    %v1580 = vpack.c.bf16 %v1570, %v1569
    %v1589 = vunpack.c.l.b16 %v1572
    %v1590 = vunpack.c.l.b16 %v1573
    %v1591 = vunpack.c.l.b16 %v1574
    %v1592 = vunpack.c.l.b16 %v1575
    %v1593 = vunpack.c.l.b16 %v1576
    %v1594 = vunpack.c.l.b16 %v1577
    %v1595 = vunpack.c.l.b16 %v1578
    %v1596 = vunpack.c.l.b16 %v1579
    %v1597 = vpack.c.b16 %v1590, %v1589
    %v1598 = vpack.c.b16 %v1592, %v1591
    %v1599 = vpack.c.b16 %v1594, %v1593
    %v1600 = vpack.c.b16 %v1596, %v1595
    %v1606 = vsel %vm817, %v1580, 0
    %1608 = vmatpush.bf16.msra.mxu0 0
    %1609 = vmatpush.bf16.msra.mxu0 0
    %1610 = vmatpush.bf16.msra.mxu0 0
    %1611 = vmatpush.bf16.msra.mxu0 0
    %1612 = vmatpush.bf16.msra.mxu0 %v1600
    %1613 = vmatpush.bf16.msra.mxu0 %v1599
    %1614 = vmatpush.bf16.msra.mxu0 %v1598
    %1615 = vmatpush.bf16.msra.mxu0 %v1597
    %1616 = vmatmul.bf16.gmra.mxu0 %v1606
    %v1617 = vpop.f32.mrf.mxu0
    %v1618 = vadd.f32 0.0, %v1617
    %v1619 = vpop.f32.mrf.mxu0
    %v1620 = vadd.f32 0.0, %v1619
    %1621 = vdwg.mxu0
    %v1622 = vadd.f32 %v1471, %v1618
    %v1623 = vadd.f32 %v1472, %v1620
    %s1624 = scalar_lea.vmem %s8, 1
    %v1625 = vld [vmem:[%s1624] sm:$0x1]
    %v1627 = vperm.slane %v1625, 0
    %v1629 = vadd.f32 %v1622, %v1627
    %v1630 = vadd.f32 %v1623, %v1627
    %v1632 = vrot.slane %v1629, 7
    %v1635 = vrot.slane %v1630, 6
    %vm1637 = vcmask 1040384
    %v1638 = vsel %vm1637, %v1632, %v1635
    %vm1639 = vcmask 254976
    %v1640 = vsel %vm1639, %v1638, 0.0
    %1641 = vadd.xlane.f32.xlu0 %v1640
    %v1642 = vpop.xlane.xlu0 %1641
    %v1643 = vmul.f32 %v1642, %v63
    %v1644 = vsub.f32 %v1638, %v1643
    %v1645 = vmul.f32 %v1644, %v1644
    %v1646 = vsel %vm1639, %v1645, 0.0
    %1647 = vadd.xlane.f32.xlu0 %v1646
    %v1648 = vpop.xlane.xlu0 %1647
    %v1649 = vmul.f32 %v1648, 0.032258064
    %v1650 = vrsqrt.pop %v1649
    %v1651 = vmul.f32 %v1650, %v1649
    %v1652 = vmul.f32 %v1651, %v1650
    %v1653 = vmul.f32 0.5, %v1652
    %v1654 = vsub.f32 1.5, %v1653
    %v1655 = vmul.f32 %v1650, %v1654
    %v1656 = vmul.f32 %v1649, %v1655
    %vm1657 = vcmp.eq.f32.partialorder %v1649, inf
    %v1658 = vsel %vm1657, %v1649, %v1656
    %vm1659 = vcmp.eq.f32.partialorder %v1649, 0.0
    %v1660 = vand.u32 %v1649, 2147483648
    %v1661 = vsel %vm1659, %v1660, %v1658
    %v1662 = vadd.f32 %v1661, 1e-06
    %v1663 = vrcp.pop %v1662
    %v1664 = vperm.slane %v48, 4
    %v1665 = vmul.f32 %v1664, %v1644
    %v1666 = vmul.f32 %v1665, %v1663
    %v1667 = vperm.slane %v49, 4
    %v1668 = vadd.f32 %v1666, %v1667
    %v1669 = vld [vmem:[%s11] sm:$0xf]
    %v1670 = vld [vmem:[%s11 + $0x4] sm:$0xf]
    %v1671 = vld [vmem:[%s11 + $0x8] sm:$0xf]
    %v1672 = vld [vmem:[%s11 + $0xc] sm:$0xf]
    %v1673 = vpack.c.bf16 %v1668, %v1668
    %v1674 = vld [vmem:[%s12] sm:$0x1]
    %v1676 = vperm.slane %v1674, 0
    %v1682 = vunpack.c.l.b16 %v1669
    %v1683 = vunpack.c.l.b16 %v1670
    %v1684 = vunpack.c.l.b16 %v1671
    %v1685 = vunpack.c.l.b16 %v1672
    %v1686 = vpack.c.b16 %v1683, %v1682
    %v1687 = vpack.c.b16 %v1685, %v1684
    %v1691 = vsel %vm50, %v1673, 0
    %1693 = vmatpush.bf16.msra.mxu0 0
    %1694 = vmatpush.bf16.msra.mxu0 0
    %1695 = vmatpush.bf16.msra.mxu0 0
    %1696 = vmatpush.bf16.msra.mxu0 0
    %1697 = vmatpush.bf16.msra.mxu0 0
    %1698 = vmatpush.bf16.msra.mxu0 0
    %1699 = vmatpush.bf16.msra.mxu0 %v1687
    %1700 = vmatpush.bf16.msra.mxu0 %v1686
    %1701 = vmatmul.bf16.gmra.mxu0 %v1691
    %v1702 = vpop.f32.mrf.mxu0
    %v1703 = vadd.f32 %v1676, %v1702
    %v1704 = vpop.f32.mrf.mxu0
    %1705 = vdwg.mxu0
    %vm1706 = vcmask 25600
    %v1707 = vsel %vm1706, %v1703, -inf
    %1708 = vmax.xlane.f32.xlu0 %v1707
    %v1709 = vpop.xlane.xlu0 %1708
    %v1710 = vsub.f32 %v1703, %v1709
    %v1711 = vmul.f32 %v1710, 1.442695
    %v1712 = vpow.pop %v1711
    %v1713 = vsel %vm1706, %v1712, 0.0
    %1714 = vadd.xlane.f32.xlu0 %v1713
    %v1715 = vpop.xlane.xlu0 %1714
    %v1716 = vrcp.pop %v1715
    %v1717 = vmul.f32 %v1712, %v1716
    %1718 = vst.msk [vmem:[#allocation2] sm:$0x3] %vm1706, %v1717
    // Predicated region
    $region54: #{_lambda_.1} parent=1 // pred_check
      _
    $region55: #{_lambda_.1} parent=1 // pred_check_branch
      %1720 = sbr.rel (0) target = $region57
    $region56: #{_lambda_.1} parent=1 // pred_region
      %1722 = vsyncadd [#allocation3], 0
      %s1724 = sshll.u32 [#allocation2], 4
      %s1725 = int_to_ptr.vmem [resolvable:$true] %s1724
      %s1726 = sshll.u32 %s13, 4
      %s1727 = int_to_ptr.hbm [resolvable:$true] %s1726
      %1729 = dma.vmem_to_hbm [thread:$0]  %s1725, 32, %s1727, [#allocation3]
    $region57: #{_lambda_.1} parent=1 // pred_fallthru
      _
    // Predicated region
    $region58: #{_lambda_.1} parent=1 // pred_check
      _
    $region59: #{_lambda_.1} parent=1 // pred_check_branch
      %1731 = sbr.rel (0) target = $region61
    $region60: #{_lambda_.1} parent=1 // pred_region
      %1733 = dma.done [#allocation3], 32
    $region61: #{_lambda_.1} parent=1 // pred_fallthru
      _
    %1734 = vsyncpa [#allocation3], 1

</llo_original>
